<compile_context>
chip_gen: v7x
topology: tpu7x:2x2x1
jax: 0.10.0
libtpu: 0.0.40
codegen_flags: <defaults>
</compile_context>

<pallas_src>
import functools
import math

import jax
import jax.numpy as jnp
from jax.experimental import pallas as pl
from jax.experimental.pallas import tpu as pltpu


# ----------------------------- Pallas kernel ------------------------------- #

def _dense_layer_kernel(x_ref, s1_ref, b1_ref, w1_ref, b2_ref, w2_ref,
                        o_ref, acc_ref, *, H, W, TR, Wp):
    """Fused _DenseLayer forward for one (batch, row-tile) grid step.

    x_ref  : (1, 1, Cin, SLABW)  bf16 input slab: TR body rows + 1 halo row
                                 above/below, columns zero-padded to Wp=W+2,
                                 flattened row-major (SLABW = (TR+2)*Wp).
    s1/b1  : (Cin, 1)  f32       folded BatchNorm1 scale / bias
    w1_ref : (Cmid, Cin) bf16    conv1 weight^T with BatchNorm2 scale folded in
    b2_ref : (Cmid, 1) f32       folded BatchNorm2 bias
    w2_ref : (9, G, Cmid) bf16   conv2 weights per tap, k = ky*3 + kx
    o_ref  : (1, G, TR*W) f32    lane-dense output tile (flat H*W layout)
    acc_ref: (G, OWp) f32        VMEM scratch accumulator on the padded grid
    """
    SLABW = x_ref.shape[-1]
    OWp = acc_ref.shape[-1]
    t_idx = pl.program_id(1)

    # --- BN1 + ReLU (f32 elementwise on the VPU; x streamed as bf16). ---
    x = x_ref[0, 0].astype(jnp.float32)                          # (Cin, SLABW)
    h = jnp.maximum(x * s1_ref[...] + b1_ref[...], 0.0)

    # --- 1x1 conv (BN2 scale pre-folded into w1) on the MXU. ---
    t1 = jnp.dot(w1_ref[...], h.astype(jnp.bfloat16),
                 preferred_element_type=jnp.float32)             # (Cmid, SLABW)

    # --- Interior mask generated in-kernel (no HBM mask input). ---
    # Slab flat position p -> local padded row r = p // Wp, column c = p % Wp.
    pos = jax.lax.broadcasted_iota(jnp.int32, (1, SLABW), 1).astype(jnp.float32)
    row_l = jnp.floor(pos * (1.0 / Wp) + 1e-3)
    col = pos - row_l * Wp
    row_g = row_l + (t_idx * TR).astype(jnp.float32)             # global padded row
    mask = ((col >= 1.0) & (col <= float(W)) &
            (row_g >= 1.0) & (row_g <= float(H))).astype(jnp.float32)

    # BN2 bias + ReLU, zero the pad ring / out-of-image halo rows.
    act = (jnp.maximum(t1 + b2_ref[...], 0.0) * mask).astype(jnp.bfloat16)

    # --- 3x3 conv: 9 unrolled matmuls accumulating into the f32 VMEM scratch.
    #     Tap (ky, kx) is the static flat shift d = ky*Wp + kx of the slab. ---
    for k in range(9):
        ky, kx = divmod(k, 3)
        d = ky * Wp + kx
        contrib = jnp.dot(w2_ref[k], act[:, d:d + OWp],
                          preferred_element_type=jnp.float32)    # (G, OWp)
        if k == 0:
            acc_ref[...] = contrib
        else:
            acc_ref[...] += contrib

    # --- Single lane-dense output store: drop the 2 pad columns per row. ---
    for y in range(TR):
        o_ref[0, :, y * W:(y + 1) * W] = (
            acc_ref[:, y * Wp:y * Wp + W].astype(o_ref.dtype))


# ------------------------------- Wrapper ----------------------------------- #

def dense_layer_forward(x_nchw, params):
    """_DenseLayer forward (eval mode). Input/output are NCHW like PyTorch."""
    s1, b1, w1f_t, b2, w2_taps = params
    N, Cin, H, W = x_nchw.shape
    Cmid = w1f_t.shape[0]
    G = w2_taps.shape[1]

    Hp, Wp = H + 2, W + 2

    # Row-tile size: smallest divisor of H whose output tile TR*W is a
    # multiple of 128 (lane-dense, unmasked vst).  Fallback: whole image
    # (block == full array dim is always legal).
    TR = H
    for cand in range(1, H + 1):
        if H % cand == 0 and (cand * W) % 128 == 0:
            TR = cand
            break
    RT = H // TR
    SLABW = (TR + 2) * Wp                  # per-tile flat slab width (exact)
    OWp = (TR - 1) * Wp + W                # padded-grid accumulator width
    TRW = TR * W                           # lane-dense output tile width

    # Layout prep in XLA (one fused pass over x): zero-pad spatially by 1,
    # cast to bf16 (halves the dominant HBM stream), gather overlapping
    # (TR+2)-row halo tiles so BlockSpecs remain non-overlapping, flatten.
    xp = jnp.pad(x_nchw, ((0, 0), (0, 0), (1, 1), (1, 1))).astype(jnp.bfloat16)
    rows = jnp.arange(RT)[:, None] * TR + jnp.arange(TR + 2)[None, :]
    xt = jnp.moveaxis(xp[:, :, rows, :], 2, 1)          # (N, RT, Cin, TR+2, Wp)
    x_tiles = xt.reshape(N, RT, Cin, SLABW)

    kernel = functools.partial(_dense_layer_kernel, H=H, W=W, TR=TR, Wp=Wp)

    # Explicit VMEM budget from the actual block / working-set bytes.
    vmem_bytes = int(
        2 * Cin * SLABW * 2                      # x tile bf16, double buffered
        + 2 * (Cmid * Cin + 9 * G * Cmid) * 2    # weights bf16, double buffered
        + 2 * (2 * Cin + Cmid) * 4               # BN scale/bias vectors
        + (Cin + 2 * Cmid) * SLABW * 4           # h, conv1 result f32
        + Cmid * SLABW * 2                       # act bf16
        + G * OWp * 4                            # f32 accumulator scratch
        + 2 * G * TRW * 4)                       # output tile, double buffered
    vmem_limit = min(100 * 1024 * 1024, max(4 * vmem_bytes, 8 * 1024 * 1024))

    out_flat = pl.pallas_call(
        kernel,
        out_shape=jax.ShapeDtypeStruct((N, G, H * W), jnp.float32),
        grid=(N, RT),
        in_specs=[
            pl.BlockSpec((1, 1, Cin, SLABW), lambda n, t: (n, t, 0, 0)),
            pl.BlockSpec((Cin, 1), lambda n, t: (0, 0)),
            pl.BlockSpec((Cin, 1), lambda n, t: (0, 0)),
            pl.BlockSpec((Cmid, Cin), lambda n, t: (0, 0)),
            pl.BlockSpec((Cmid, 1), lambda n, t: (0, 0)),
            pl.BlockSpec((9, G, Cmid), lambda n, t: (0, 0, 0)),
        ],
        out_specs=pl.BlockSpec((1, G, TRW), lambda n, t: (n, 0, t)),
        scratch_shapes=[pltpu.VMEM((G, OWp), jnp.float32)],
        compiler_params=pltpu.CompilerParams(
            dimension_semantics=("parallel", "parallel"),
            vmem_limit_bytes=vmem_limit),
    )(x_tiles, s1, b1, w1f_t, b2, w2_taps)

    # Free metadata reshape (row-major), no crop / extra HBM pass.
    return out_flat.reshape(N, G, H, W)


# ------------------------------ Reference ----------------------------------- #

def reference_forward(x_nchw, ref_params):
    """Pure-JAX f32 reference (independent of the kernel's tap decomposition)."""
    g1, be1, mu1, v1, g2, be2, mu2, v2, w1_oihw, w2_oihw, eps = ref_params
    s1 = g1 / jnp.sqrt(v1 + eps)
    b1 = be1 - mu1 * s1
    s2 = g2 / jnp.sqrt(v2 + eps)
    b2 = be2 - mu2 * s2

    h = jnp.maximum(x_nchw * s1[None, :, None, None] + b1[None, :, None, None], 0.0)
    t = jax.lax.conv_general_dilated(h, w1_oihw, (1, 1), "VALID",
                                     dimension_numbers=("NCHW", "OIHW", "NCHW"))
    t = jnp.maximum(t * s2[None, :, None, None] + b2[None, :, None, None], 0.0)
    out = jax.lax.conv_general_dilated(t, w2_oihw, (1, 1), ((1, 1), (1, 1)),
                                       dimension_numbers=("NCHW", "OIHW", "NCHW"))
    return out


# --------------------------------- Main ------------------------------------- #

if __name__ == "__main__":
    # Module config: num_features_in=8, growth_rate=8 -> bottleneck Cmid=32, out G=8.
    N, Cin, H, W = 2, 8, 16, 16
    growth = 8
    Cmid = 4 * growth
    G = growth
    eps = 1e-5

    key = jax.random.PRNGKey(0)
    ks = jax.random.split(key, 11)

    x = jax.random.normal(ks[0], (N, Cin, H, W), jnp.float32)

    # Conv weights (PyTorch OIHW layouts), deterministically initialized.
    w1_oihw = jax.random.normal(ks[1], (Cmid, Cin, 1, 1), jnp.float32) / math.sqrt(Cin)
    w2_oihw = jax.random.normal(ks[2], (G, Cmid, 3, 3), jnp.float32) / math.sqrt(Cmid * 9)

    # BatchNorm parameters / running stats (eval mode).
    g1 = jax.random.uniform(ks[3], (Cin,), minval=0.5, maxval=1.5)
    be1 = jax.random.normal(ks[4], (Cin,)) * 0.1
    mu1 = jax.random.normal(ks[5], (Cin,)) * 0.1
    v1 = jax.random.uniform(ks[6], (Cin,), minval=0.5, maxval=1.5)
    g2 = jax.random.uniform(ks[7], (Cmid,), minval=0.5, maxval=1.5)
    be2 = jax.random.normal(ks[8], (Cmid,)) * 0.1
    mu2 = jax.random.normal(ks[9], (Cmid,)) * 0.1
    v2 = jax.random.uniform(ks[10], (Cmid,), minval=0.5, maxval=1.5)

    # Fold BN stats into scale/bias; fold BN2 scale into the 1x1 conv weights.
    s1 = (g1 / jnp.sqrt(v1 + eps)).reshape(Cin, 1)
    b1 = (be1 - mu1 * g1 / jnp.sqrt(v1 + eps)).reshape(Cin, 1)
    s2_vec = g2 / jnp.sqrt(v2 + eps)
    b2 = (be2 - mu2 * s2_vec).reshape(Cmid, 1)

    # Kernel-friendly weight layouts (bf16 for the MXU, f32 accumulation in-kernel).
    w1f_t = (w1_oihw[:, :, 0, 0] * s2_vec[:, None]).astype(jnp.bfloat16)   # (Cmid, Cin)
    w2_taps = jnp.transpose(w2_oihw, (2, 3, 0, 1)).reshape(9, G, Cmid)     # [ky*3+kx, g, c]
    w2_taps = w2_taps.astype(jnp.bfloat16)

    params = (s1, b1, w1f_t, b2, w2_taps)

    out = jax.jit(dense_layer_forward)(x, params)
    out = jax.block_until_ready(out)

    ref = reference_forward(
        x, (g1, be1, mu1, v1, g2, be2, mu2, v2, w1_oihw, w2_oihw, eps))
    max_err = float(jnp.max(jnp.abs(out - ref)))
    assert out.shape == (N, G, H, W), out.shape
    # x, intermediate activations and weights are quantized to bf16 for the MXU
    # (f32 accumulation); eval-inference precision -> bf16-level tolerance.
    assert max_err < 1e-1, f"mismatch vs reference: {max_err}"

    print("KERNEL_OK")
</pallas_src>

<mosaic_0001>
module attributes {stable_mosaic.version = 11 : i64} {
  func.func @_dense_layer_kernel(%arg0: i32, %arg1: i32, %arg2: memref<1x1x8x180xbf16, #tpu.memory_space<vmem>>, %arg3: memref<8x1xf32, #tpu.memory_space<vmem>>, %arg4: memref<8x1xf32, #tpu.memory_space<vmem>>, %arg5: memref<32x8xbf16, #tpu.memory_space<vmem>>, %arg6: memref<32x1xf32, #tpu.memory_space<vmem>>, %arg7: memref<9x8x32xbf16, #tpu.memory_space<vmem>>, %arg8: memref<1x8x128xf32, #tpu.memory_space<vmem>>, %arg9: memref<8x142xf32, #tpu.memory_space<vmem>>) attributes {dimension_semantics = [#tpu.dimension_semantics<parallel>, #tpu.dimension_semantics<parallel>], iteration_bounds = array<i64: 2, 2>, scalar_prefetch = 0 : i64, scratch_operands = 1 : i64, tpu.core_type = #tpu.core_type<tc>, window_params = [{transform_indices = @transform_0, window_bounds = array<i64: 1, 1, 8, 180>}, {pipeline_mode = #tpu.pipeline_mode<synchronous>, transform_indices = @transform_1, window_bounds = array<i64: 8, 1>}, {pipeline_mode = #tpu.pipeline_mode<synchronous>, transform_indices = @transform_2, window_bounds = array<i64: 8, 1>}, {pipeline_mode = #tpu.pipeline_mode<synchronous>, transform_indices = @transform_3, window_bounds = array<i64: 32, 8>}, {pipeline_mode = #tpu.pipeline_mode<synchronous>, transform_indices = @transform_4, window_bounds = array<i64: 32, 1>}, {pipeline_mode = #tpu.pipeline_mode<synchronous>, transform_indices = @transform_5, window_bounds = array<i64: 9, 8, 32>}, {transform_indices = @transform_6, window_bounds = array<i64: 1, 8, 128>}]} {
    %c0 = arith.constant 0 : index
    %c0_0 = arith.constant 0 : index
    %c0_1 = arith.constant 0 : index
    %c0_2 = arith.constant 0 : index
    %0 = vector.load %arg2[%c0, %c0_0, %c0_1, %c0_2] : memref<1x1x8x180xbf16, #tpu.memory_space<vmem>>, vector<1x1x8x180xbf16>
    %1 = vector.shape_cast %0 : vector<1x1x8x180xbf16> to vector<8x180xbf16>
    %2 = arith.extf %1 : vector<8x180xbf16> to vector<8x180xf32>
    %c0_3 = arith.constant 0 : index
    %c0_4 = arith.constant 0 : index
    %3 = vector.load %arg3[%c0_3, %c0_4] : memref<8x1xf32, #tpu.memory_space<vmem>>, vector<8x1xf32>
    %4 = vector.broadcast %3 : vector<8x1xf32> to vector<8x180xf32>
    %5 = arith.mulf %2, %4 : vector<8x180xf32>
    %c0_5 = arith.constant 0 : index
    %c0_6 = arith.constant 0 : index
    %6 = vector.load %arg4[%c0_5, %c0_6] : memref<8x1xf32, #tpu.memory_space<vmem>>, vector<8x1xf32>
    %7 = vector.broadcast %6 : vector<8x1xf32> to vector<8x180xf32>
    %8 = arith.addf %5, %7 : vector<8x180xf32>
    %cst = arith.constant 0.000000e+00 : f32
    %9 = vector.broadcast %cst : f32 to vector<8x180xf32>
    %10 = arith.maximumf %8, %9 : vector<8x180xf32>
    %c0_7 = arith.constant 0 : index
    %c0_8 = arith.constant 0 : index
    %11 = vector.load %arg5[%c0_7, %c0_8] : memref<32x8xbf16, #tpu.memory_space<vmem>>, vector<32x8xbf16>
    %12 = arith.truncf %10 : vector<8x180xf32> to vector<8x180xbf16>
    %cst_9 = arith.constant dense<0.000000e+00> : vector<32x180xf32>
    %13 = tpu.matmul %11, %12, %cst_9 {dimension_numbers = #tpu.dot_dimension_numbers<[1], [0], [0], [1], [0, 0, 1, 1], [], []>} : vector<32x8xbf16>, vector<8x180xbf16>, vector<32x180xf32> -> vector<32x180xf32>
    %14 = tpu.iota {dimensions = array<i32: 1>} : vector<1x180xi32>
    %15 = arith.sitofp %14 : vector<1x180xi32> to vector<1x180xf32>
    %cst_10 = arith.constant 0.055555556 : f32
    %16 = vector.broadcast %cst_10 : f32 to vector<1x180xf32>
    %17 = arith.mulf %15, %16 : vector<1x180xf32>
    %cst_11 = arith.constant 1.000000e-03 : f32
    %18 = vector.broadcast %cst_11 : f32 to vector<1x180xf32>
    %19 = arith.addf %17, %18 : vector<1x180xf32>
    %20 = math.floor %19 : vector<1x180xf32>
    %cst_12 = arith.constant 1.800000e+01 : f32
    %21 = vector.broadcast %cst_12 : f32 to vector<1x180xf32>
    %22 = arith.mulf %20, %21 : vector<1x180xf32>
    %23 = arith.subf %15, %22 : vector<1x180xf32>
    %c8_i32 = arith.constant 8 : i32
    %24 = arith.muli %arg1, %c8_i32 : i32
    %25 = arith.sitofp %24 : i32 to f32
    %26 = vector.broadcast %25 : f32 to vector<1x180xf32>
    %27 = arith.addf %20, %26 : vector<1x180xf32>
    %cst_13 = arith.constant 1.000000e+00 : f32
    %28 = vector.broadcast %cst_13 : f32 to vector<1x180xf32>
    %29 = arith.cmpf oge, %23, %28 : vector<1x180xf32>
    %cst_14 = arith.constant 1.600000e+01 : f32
    %30 = vector.broadcast %cst_14 : f32 to vector<1x180xf32>
    %31 = arith.cmpf ole, %23, %30 : vector<1x180xf32>
    %32 = arith.andi %29, %31 : vector<1x180xi1>
    %cst_15 = arith.constant 1.000000e+00 : f32
    %33 = vector.broadcast %cst_15 : f32 to vector<1x180xf32>
    %34 = arith.cmpf oge, %27, %33 : vector<1x180xf32>
    %35 = arith.andi %32, %34 : vector<1x180xi1>
    %cst_16 = arith.constant 1.600000e+01 : f32
    %36 = vector.broadcast %cst_16 : f32 to vector<1x180xf32>
    %37 = arith.cmpf ole, %27, %36 : vector<1x180xf32>
    %38 = arith.andi %35, %37 : vector<1x180xi1>
    %39 = arith.extui %38 : vector<1x180xi1> to vector<1x180xi32>
    %40 = arith.sitofp %39 : vector<1x180xi32> to vector<1x180xf32>
    %c0_17 = arith.constant 0 : index
    %c0_18 = arith.constant 0 : index
    %41 = vector.load %arg6[%c0_17, %c0_18] : memref<32x1xf32, #tpu.memory_space<vmem>>, vector<32x1xf32>
    %42 = vector.broadcast %41 : vector<32x1xf32> to vector<32x180xf32>
    %43 = arith.addf %13, %42 : vector<32x180xf32>
    %cst_19 = arith.constant 0.000000e+00 : f32
    %44 = vector.broadcast %cst_19 : f32 to vector<32x180xf32>
    %45 = arith.maximumf %43, %44 : vector<32x180xf32>
    %46 = vector.broadcast %40 : vector<1x180xf32> to vector<32x180xf32>
    %47 = arith.mulf %45, %46 : vector<32x180xf32>
    %48 = arith.truncf %47 : vector<32x180xf32> to vector<32x180xbf16>
    %c0_20 = arith.constant 0 : index
    %c0_21 = arith.constant 0 : index
    %c0_22 = arith.constant 0 : index
    %49 = vector.load %arg7[%c0_20, %c0_21, %c0_22] : memref<9x8x32xbf16, #tpu.memory_space<vmem>>, vector<1x8x32xbf16>
    %50 = vector.shape_cast %49 : vector<1x8x32xbf16> to vector<8x32xbf16>
    %51 = vector.extract_strided_slice %48 {offsets = [0, 0], sizes = [32, 142], strides = [1, 1]} : vector<32x180xbf16> to vector<32x142xbf16>
    %cst_23 = arith.constant dense<0.000000e+00> : vector<8x142xf32>
    %52 = tpu.matmul %50, %51, %cst_23 {dimension_numbers = #tpu.dot_dimension_numbers<[1], [0], [0], [1], [0, 0, 1, 1], [], []>} : vector<8x32xbf16>, vector<32x142xbf16>, vector<8x142xf32> -> vector<8x142xf32>
    %c0_24 = arith.constant 0 : index
    %c0_25 = arith.constant 0 : index
    %53 = vector.load %arg9[%c0_24, %c0_25] : memref<8x142xf32, #tpu.memory_space<vmem>>, vector<8x142xf32>
    tpu.vector_store %arg9[%c0_24, %c0_25], %52 {strides = array<i32>} : memref<8x142xf32, #tpu.memory_space<vmem>>, vector<8x142xf32>,
    %c1 = arith.constant 1 : index
    %c0_26 = arith.constant 0 : index
    %c0_27 = arith.constant 0 : index
    %54 = vector.load %arg7[%c1, %c0_26, %c0_27] : memref<9x8x32xbf16, #tpu.memory_space<vmem>>, vector<1x8x32xbf16>
    %55 = vector.shape_cast %54 : vector<1x8x32xbf16> to vector<8x32xbf16>
    %56 = vector.extract_strided_slice %48 {offsets = [0, 1], sizes = [32, 142], strides = [1, 1]} : vector<32x180xbf16> to vector<32x142xbf16>
    %cst_28 = arith.constant dense<0.000000e+00> : vector<8x142xf32>
    %57 = tpu.matmul %55, %56, %cst_28 {dimension_numbers = #tpu.dot_dimension_numbers<[1], [0], [0], [1], [0, 0, 1, 1], [], []>} : vector<8x32xbf16>, vector<32x142xbf16>, vector<8x142xf32> -> vector<8x142xf32>
    %c0_29 = arith.constant 0 : index
    %c0_30 = arith.constant 0 : index
    %58 = vector.load %arg9[%c0_29, %c0_30] : memref<8x142xf32, #tpu.memory_space<vmem>>, vector<8x142xf32>
    %59 = arith.addf %58, %57 : vector<8x142xf32>
    %c0_31 = arith.constant 0 : index
    %c0_32 = arith.constant 0 : index
    %60 = vector.load %arg9[%c0_31, %c0_32] : memref<8x142xf32, #tpu.memory_space<vmem>>, vector<8x142xf32>
    tpu.vector_store %arg9[%c0_31, %c0_32], %59 {strides = array<i32>} : memref<8x142xf32, #tpu.memory_space<vmem>>, vector<8x142xf32>,
    %c2 = arith.constant 2 : index
    %c0_33 = arith.constant 0 : index
    %c0_34 = arith.constant 0 : index
    %61 = vector.load %arg7[%c2, %c0_33, %c0_34] : memref<9x8x32xbf16, #tpu.memory_space<vmem>>, vector<1x8x32xbf16>
    %62 = vector.shape_cast %61 : vector<1x8x32xbf16> to vector<8x32xbf16>
    %63 = vector.extract_strided_slice %48 {offsets = [0, 2], sizes = [32, 142], strides = [1, 1]} : vector<32x180xbf16> to vector<32x142xbf16>
    %cst_35 = arith.constant dense<0.000000e+00> : vector<8x142xf32>
    %64 = tpu.matmul %62, %63, %cst_35 {dimension_numbers = #tpu.dot_dimension_numbers<[1], [0], [0], [1], [0, 0, 1, 1], [], []>} : vector<8x32xbf16>, vector<32x142xbf16>, vector<8x142xf32> -> vector<8x142xf32>
    %c0_36 = arith.constant 0 : index
    %c0_37 = arith.constant 0 : index
    %65 = vector.load %arg9[%c0_36, %c0_37] : memref<8x142xf32, #tpu.memory_space<vmem>>, vector<8x142xf32>
    %66 = arith.addf %65, %64 : vector<8x142xf32>
    %c0_38 = arith.constant 0 : index
    %c0_39 = arith.constant 0 : index
    %67 = vector.load %arg9[%c0_38, %c0_39] : memref<8x142xf32, #tpu.memory_space<vmem>>, vector<8x142xf32>
    tpu.vector_store %arg9[%c0_38, %c0_39], %66 {strides = array<i32>} : memref<8x142xf32, #tpu.memory_space<vmem>>, vector<8x142xf32>,
    %c3 = arith.constant 3 : index
    %c0_40 = arith.constant 0 : index
    %c0_41 = arith.constant 0 : index
    %68 = vector.load %arg7[%c3, %c0_40, %c0_41] : memref<9x8x32xbf16, #tpu.memory_space<vmem>>, vector<1x8x32xbf16>
    %69 = vector.shape_cast %68 : vector<1x8x32xbf16> to vector<8x32xbf16>
    %70 = vector.extract_strided_slice %48 {offsets = [0, 18], sizes = [32, 142], strides = [1, 1]} : vector<32x180xbf16> to vector<32x142xbf16>
    %cst_42 = arith.constant dense<0.000000e+00> : vector<8x142xf32>
    %71 = tpu.matmul %69, %70, %cst_42 {dimension_numbers = #tpu.dot_dimension_numbers<[1], [0], [0], [1], [0, 0, 1, 1], [], []>} : vector<8x32xbf16>, vector<32x142xbf16>, vector<8x142xf32> -> vector<8x142xf32>
    %c0_43 = arith.constant 0 : index
    %c0_44 = arith.constant 0 : index
    %72 = vector.load %arg9[%c0_43, %c0_44] : memref<8x142xf32, #tpu.memory_space<vmem>>, vector<8x142xf32>
    %73 = arith.addf %72, %71 : vector<8x142xf32>
    %c0_45 = arith.constant 0 : index
    %c0_46 = arith.constant 0 : index
    %74 = vector.load %arg9[%c0_45, %c0_46] : memref<8x142xf32, #tpu.memory_space<vmem>>, vector<8x142xf32>
    tpu.vector_store %arg9[%c0_45, %c0_46], %73 {strides = array<i32>} : memref<8x142xf32, #tpu.memory_space<vmem>>, vector<8x142xf32>,
    %c4 = arith.constant 4 : index
    %c0_47 = arith.constant 0 : index
    %c0_48 = arith.constant 0 : index
    %75 = vector.load %arg7[%c4, %c0_47, %c0_48] : memref<9x8x32xbf16, #tpu.memory_space<vmem>>, vector<1x8x32xbf16>
    %76 = vector.shape_cast %75 : vector<1x8x32xbf16> to vector<8x32xbf16>
    %77 = vector.extract_strided_slice %48 {offsets = [0, 19], sizes = [32, 142], strides = [1, 1]} : vector<32x180xbf16> to vector<32x142xbf16>
    %cst_49 = arith.constant dense<0.000000e+00> : vector<8x142xf32>
    %78 = tpu.matmul %76, %77, %cst_49 {dimension_numbers = #tpu.dot_dimension_numbers<[1], [0], [0], [1], [0, 0, 1, 1], [], []>} : vector<8x32xbf16>, vector<32x142xbf16>, vector<8x142xf32> -> vector<8x142xf32>
    %c0_50 = arith.constant 0 : index
    %c0_51 = arith.constant 0 : index
    %79 = vector.load %arg9[%c0_50, %c0_51] : memref<8x142xf32, #tpu.memory_space<vmem>>, vector<8x142xf32>
    %80 = arith.addf %79, %78 : vector<8x142xf32>
    %c0_52 = arith.constant 0 : index
    %c0_53 = arith.constant 0 : index
    %81 = vector.load %arg9[%c0_52, %c0_53] : memref<8x142xf32, #tpu.memory_space<vmem>>, vector<8x142xf32>
    tpu.vector_store %arg9[%c0_52, %c0_53], %80 {strides = array<i32>} : memref<8x142xf32, #tpu.memory_space<vmem>>, vector<8x142xf32>,
    %c5 = arith.constant 5 : index
    %c0_54 = arith.constant 0 : index
    %c0_55 = arith.constant 0 : index
    %82 = vector.load %arg7[%c5, %c0_54, %c0_55] : memref<9x8x32xbf16, #tpu.memory_space<vmem>>, vector<1x8x32xbf16>
    %83 = vector.shape_cast %82 : vector<1x8x32xbf16> to vector<8x32xbf16>
    %84 = vector.extract_strided_slice %48 {offsets = [0, 20], sizes = [32, 142], strides = [1, 1]} : vector<32x180xbf16> to vector<32x142xbf16>
    %cst_56 = arith.constant dense<0.000000e+00> : vector<8x142xf32>
    %85 = tpu.matmul %83, %84, %cst_56 {dimension_numbers = #tpu.dot_dimension_numbers<[1], [0], [0], [1], [0, 0, 1, 1], [], []>} : vector<8x32xbf16>, vector<32x142xbf16>, vector<8x142xf32> -> vector<8x142xf32>
    %c0_57 = arith.constant 0 : index
    %c0_58 = arith.constant 0 : index
    %86 = vector.load %arg9[%c0_57, %c0_58] : memref<8x142xf32, #tpu.memory_space<vmem>>, vector<8x142xf32>
    %87 = arith.addf %86, %85 : vector<8x142xf32>
    %c0_59 = arith.constant 0 : index
    %c0_60 = arith.constant 0 : index
    %88 = vector.load %arg9[%c0_59, %c0_60] : memref<8x142xf32, #tpu.memory_space<vmem>>, vector<8x142xf32>
    tpu.vector_store %arg9[%c0_59, %c0_60], %87 {strides = array<i32>} : memref<8x142xf32, #tpu.memory_space<vmem>>, vector<8x142xf32>,
    %c6 = arith.constant 6 : index
    %c0_61 = arith.constant 0 : index
    %c0_62 = arith.constant 0 : index
    %89 = vector.load %arg7[%c6, %c0_61, %c0_62] : memref<9x8x32xbf16, #tpu.memory_space<vmem>>, vector<1x8x32xbf16>
    %90 = vector.shape_cast %89 : vector<1x8x32xbf16> to vector<8x32xbf16>
    %91 = vector.extract_strided_slice %48 {offsets = [0, 36], sizes = [32, 142], strides = [1, 1]} : vector<32x180xbf16> to vector<32x142xbf16>
    %cst_63 = arith.constant dense<0.000000e+00> : vector<8x142xf32>
    %92 = tpu.matmul %90, %91, %cst_63 {dimension_numbers = #tpu.dot_dimension_numbers<[1], [0], [0], [1], [0, 0, 1, 1], [], []>} : vector<8x32xbf16>, vector<32x142xbf16>, vector<8x142xf32> -> vector<8x142xf32>
    %c0_64 = arith.constant 0 : index
    %c0_65 = arith.constant 0 : index
    %93 = vector.load %arg9[%c0_64, %c0_65] : memref<8x142xf32, #tpu.memory_space<vmem>>, vector<8x142xf32>
    %94 = arith.addf %93, %92 : vector<8x142xf32>
    %c0_66 = arith.constant 0 : index
    %c0_67 = arith.constant 0 : index
    %95 = vector.load %arg9[%c0_66, %c0_67] : memref<8x142xf32, #tpu.memory_space<vmem>>, vector<8x142xf32>
    tpu.vector_store %arg9[%c0_66, %c0_67], %94 {strides = array<i32>} : memref<8x142xf32, #tpu.memory_space<vmem>>, vector<8x142xf32>,
    %c7 = arith.constant 7 : index
    %c0_68 = arith.constant 0 : index
    %c0_69 = arith.constant 0 : index
    %96 = vector.load %arg7[%c7, %c0_68, %c0_69] : memref<9x8x32xbf16, #tpu.memory_space<vmem>>, vector<1x8x32xbf16>
    %97 = vector.shape_cast %96 : vector<1x8x32xbf16> to vector<8x32xbf16>
    %98 = vector.extract_strided_slice %48 {offsets = [0, 37], sizes = [32, 142], strides = [1, 1]} : vector<32x180xbf16> to vector<32x142xbf16>
    %cst_70 = arith.constant dense<0.000000e+00> : vector<8x142xf32>
    %99 = tpu.matmul %97, %98, %cst_70 {dimension_numbers = #tpu.dot_dimension_numbers<[1], [0], [0], [1], [0, 0, 1, 1], [], []>} : vector<8x32xbf16>, vector<32x142xbf16>, vector<8x142xf32> -> vector<8x142xf32>
    %c0_71 = arith.constant 0 : index
    %c0_72 = arith.constant 0 : index
    %100 = vector.load %arg9[%c0_71, %c0_72] : memref<8x142xf32, #tpu.memory_space<vmem>>, vector<8x142xf32>
    %101 = arith.addf %100, %99 : vector<8x142xf32>
    %c0_73 = arith.constant 0 : index
    %c0_74 = arith.constant 0 : index
    %102 = vector.load %arg9[%c0_73, %c0_74] : memref<8x142xf32, #tpu.memory_space<vmem>>, vector<8x142xf32>
    tpu.vector_store %arg9[%c0_73, %c0_74], %101 {strides = array<i32>} : memref<8x142xf32, #tpu.memory_space<vmem>>, vector<8x142xf32>,
    %c8 = arith.constant 8 : index
    %c0_75 = arith.constant 0 : index
    %c0_76 = arith.constant 0 : index
    %103 = vector.load %arg7[%c8, %c0_75, %c0_76] : memref<9x8x32xbf16, #tpu.memory_space<vmem>>, vector<1x8x32xbf16>
    %104 = vector.shape_cast %103 : vector<1x8x32xbf16> to vector<8x32xbf16>
    %105 = vector.extract_strided_slice %48 {offsets = [0, 38], sizes = [32, 142], strides = [1, 1]} : vector<32x180xbf16> to vector<32x142xbf16>
    %cst_77 = arith.constant dense<0.000000e+00> : vector<8x142xf32>
    %106 = tpu.matmul %104, %105, %cst_77 {dimension_numbers = #tpu.dot_dimension_numbers<[1], [0], [0], [1], [0, 0, 1, 1], [], []>} : vector<8x32xbf16>, vector<32x142xbf16>, vector<8x142xf32> -> vector<8x142xf32>
    %c0_78 = arith.constant 0 : index
    %c0_79 = arith.constant 0 : index
    %107 = vector.load %arg9[%c0_78, %c0_79] : memref<8x142xf32, #tpu.memory_space<vmem>>, vector<8x142xf32>
    %108 = arith.addf %107, %106 : vector<8x142xf32>
    %c0_80 = arith.constant 0 : index
    %c0_81 = arith.constant 0 : index
    %109 = vector.load %arg9[%c0_80, %c0_81] : memref<8x142xf32, #tpu.memory_space<vmem>>, vector<8x142xf32>
    tpu.vector_store %arg9[%c0_80, %c0_81], %108 {strides = array<i32>} : memref<8x142xf32, #tpu.memory_space<vmem>>, vector<8x142xf32>,
    %c0_82 = arith.constant 0 : index
    %c0_83 = arith.constant 0 : index
    %110 = vector.load %arg9[%c0_82, %c0_83] : memref<8x142xf32, #tpu.memory_space<vmem>>, vector<8x16xf32>
    %c0_84 = arith.constant 0 : index
    %c0_85 = arith.constant 0 : index
    %c0_86 = arith.constant 0 : index
    %111 = vector.load %arg8[%c0_84, %c0_85, %c0_86] : memref<1x8x128xf32, #tpu.memory_space<vmem>>, vector<1x8x16xf32>
    %112 = vector.shape_cast %111 : vector<1x8x16xf32> to vector<8x16xf32>
    %113 = vector.shape_cast %110 : vector<8x16xf32> to vector<1x8x16xf32>
    tpu.vector_store %arg8[%c0_84, %c0_85, %c0_86], %113 {strides = array<i32>} : memref<1x8x128xf32, #tpu.memory_space<vmem>>, vector<1x8x16xf32>,
    %c0_87 = arith.constant 0 : index
    %c18 = arith.constant 18 : index
    %114 = vector.load %arg9[%c0_87, %c18] : memref<8x142xf32, #tpu.memory_space<vmem>>, vector<8x16xf32>
    %c0_88 = arith.constant 0 : index
    %c0_89 = arith.constant 0 : index
    %c16 = arith.constant 16 : index
    %115 = vector.load %arg8[%c0_88, %c0_89, %c16] : memref<1x8x128xf32, #tpu.memory_space<vmem>>, vector<1x8x16xf32>
    %116 = vector.shape_cast %115 : vector<1x8x16xf32> to vector<8x16xf32>
    %117 = vector.shape_cast %114 : vector<8x16xf32> to vector<1x8x16xf32>
    tpu.vector_store %arg8[%c0_88, %c0_89, %c16], %117 {strides = array<i32>} : memref<1x8x128xf32, #tpu.memory_space<vmem>>, vector<1x8x16xf32>,
    %c0_90 = arith.constant 0 : index
    %c36 = arith.constant 36 : index
    %118 = vector.load %arg9[%c0_90, %c36] : memref<8x142xf32, #tpu.memory_space<vmem>>, vector<8x16xf32>
    %c0_91 = arith.constant 0 : index
    %c0_92 = arith.constant 0 : index
    %c32 = arith.constant 32 : index
    %119 = vector.load %arg8[%c0_91, %c0_92, %c32] : memref<1x8x128xf32, #tpu.memory_space<vmem>>, vector<1x8x16xf32>
    %120 = vector.shape_cast %119 : vector<1x8x16xf32> to vector<8x16xf32>
    %121 = vector.shape_cast %118 : vector<8x16xf32> to vector<1x8x16xf32>
    tpu.vector_store %arg8[%c0_91, %c0_92, %c32], %121 {strides = array<i32>} : memref<1x8x128xf32, #tpu.memory_space<vmem>>, vector<1x8x16xf32>,
    %c0_93 = arith.constant 0 : index
    %c54 = arith.constant 54 : index
    %122 = vector.load %arg9[%c0_93, %c54] : memref<8x142xf32, #tpu.memory_space<vmem>>, vector<8x16xf32>
    %c0_94 = arith.constant 0 : index
    %c0_95 = arith.constant 0 : index
    %c48 = arith.constant 48 : index
    %123 = vector.load %arg8[%c0_94, %c0_95, %c48] : memref<1x8x128xf32, #tpu.memory_space<vmem>>, vector<1x8x16xf32>
    %124 = vector.shape_cast %123 : vector<1x8x16xf32> to vector<8x16xf32>
    %125 = vector.shape_cast %122 : vector<8x16xf32> to vector<1x8x16xf32>
    tpu.vector_store %arg8[%c0_94, %c0_95, %c48], %125 {strides = array<i32>} : memref<1x8x128xf32, #tpu.memory_space<vmem>>, vector<1x8x16xf32>,
    %c0_96 = arith.constant 0 : index
    %c72 = arith.constant 72 : index
    %126 = vector.load %arg9[%c0_96, %c72] : memref<8x142xf32, #tpu.memory_space<vmem>>, vector<8x16xf32>
    %c0_97 = arith.constant 0 : index
    %c0_98 = arith.constant 0 : index
    %c64 = arith.constant 64 : index
    %127 = vector.load %arg8[%c0_97, %c0_98, %c64] : memref<1x8x128xf32, #tpu.memory_space<vmem>>, vector<1x8x16xf32>
    %128 = vector.shape_cast %127 : vector<1x8x16xf32> to vector<8x16xf32>
    %129 = vector.shape_cast %126 : vector<8x16xf32> to vector<1x8x16xf32>
    tpu.vector_store %arg8[%c0_97, %c0_98, %c64], %129 {strides = array<i32>} : memref<1x8x128xf32, #tpu.memory_space<vmem>>, vector<1x8x16xf32>,
    %c0_99 = arith.constant 0 : index
    %c90 = arith.constant 90 : index
    %130 = vector.load %arg9[%c0_99, %c90] : memref<8x142xf32, #tpu.memory_space<vmem>>, vector<8x16xf32>
    %c0_100 = arith.constant 0 : index
    %c0_101 = arith.constant 0 : index
    %c80 = arith.constant 80 : index
    %131 = vector.load %arg8[%c0_100, %c0_101, %c80] : memref<1x8x128xf32, #tpu.memory_space<vmem>>, vector<1x8x16xf32>
    %132 = vector.shape_cast %131 : vector<1x8x16xf32> to vector<8x16xf32>
    %133 = vector.shape_cast %130 : vector<8x16xf32> to vector<1x8x16xf32>
    tpu.vector_store %arg8[%c0_100, %c0_101, %c80], %133 {strides = array<i32>} : memref<1x8x128xf32, #tpu.memory_space<vmem>>, vector<1x8x16xf32>,
    %c0_102 = arith.constant 0 : index
    %c108 = arith.constant 108 : index
    %134 = vector.load %arg9[%c0_102, %c108] : memref<8x142xf32, #tpu.memory_space<vmem>>, vector<8x16xf32>
    %c0_103 = arith.constant 0 : index
    %c0_104 = arith.constant 0 : index
    %c96 = arith.constant 96 : index
    %135 = vector.load %arg8[%c0_103, %c0_104, %c96] : memref<1x8x128xf32, #tpu.memory_space<vmem>>, vector<1x8x16xf32>
    %136 = vector.shape_cast %135 : vector<1x8x16xf32> to vector<8x16xf32>
    %137 = vector.shape_cast %134 : vector<8x16xf32> to vector<1x8x16xf32>
    tpu.vector_store %arg8[%c0_103, %c0_104, %c96], %137 {strides = array<i32>} : memref<1x8x128xf32, #tpu.memory_space<vmem>>, vector<1x8x16xf32>,
    %c0_105 = arith.constant 0 : index
    %c126 = arith.constant 126 : index
    %138 = vector.load %arg9[%c0_105, %c126] : memref<8x142xf32, #tpu.memory_space<vmem>>, vector<8x16xf32>
    %c0_106 = arith.constant 0 : index
    %c0_107 = arith.constant 0 : index
    %c112 = arith.constant 112 : index
    %139 = vector.load %arg8[%c0_106, %c0_107, %c112] : memref<1x8x128xf32, #tpu.memory_space<vmem>>, vector<1x8x16xf32>
    %140 = vector.shape_cast %139 : vector<1x8x16xf32> to vector<8x16xf32>
    %141 = vector.shape_cast %138 : vector<8x16xf32> to vector<1x8x16xf32>
    tpu.vector_store %arg8[%c0_106, %c0_107, %c112], %141 {strides = array<i32>} : memref<1x8x128xf32, #tpu.memory_space<vmem>>, vector<1x8x16xf32>,
    return
  }
  func.func @transform_0(%arg0: i32, %arg1: i32) -> (i32, i32, i32, i32) {
    %c0_i32 = arith.constant 0 : i32
    %c0_i32_0 = arith.constant 0 : i32
    %c0_i32_1 = arith.constant 0 : i32
    return %arg0, %arg1, %c0_i32, %c0_i32_0 : i32, i32, i32, i32
  }
  func.func @transform_1(%arg0: i32, %arg1: i32) -> (i32, i32) {
    %c0_i32 = arith.constant 0 : i32
    %c0_i32_0 = arith.constant 0 : i32
    %c0_i32_1 = arith.constant 0 : i32
    return %c0_i32, %c0_i32_0 : i32, i32
  }
  func.func @transform_2(%arg0: i32, %arg1: i32) -> (i32, i32) {
    %c0_i32 = arith.constant 0 : i32
    %c0_i32_0 = arith.constant 0 : i32
    %c0_i32_1 = arith.constant 0 : i32
    return %c0_i32, %c0_i32_0 : i32, i32
  }
  func.func @transform_3(%arg0: i32, %arg1: i32) -> (i32, i32) {
    %c0_i32 = arith.constant 0 : i32
    %c0_i32_0 = arith.constant 0 : i32
    %c0_i32_1 = arith.constant 0 : i32
    return %c0_i32, %c0_i32_0 : i32, i32
  }
  func.func @transform_4(%arg0: i32, %arg1: i32) -> (i32, i32) {
    %c0_i32 = arith.constant 0 : i32
    %c0_i32_0 = arith.constant 0 : i32
    %c0_i32_1 = arith.constant 0 : i32
    return %c0_i32, %c0_i32_0 : i32, i32
  }
  func.func @transform_5(%arg0: i32, %arg1: i32) -> (i32, i32, i32) {
    %c0_i32 = arith.constant 0 : i32
    %c0_i32_0 = arith.constant 0 : i32
    %c0_i32_1 = arith.constant 0 : i32
    %c0_i32_2 = arith.constant 0 : i32
    return %c0_i32, %c0_i32_0, %c0_i32_1 : i32, i32, i32
  }
  func.func @transform_6(%arg0: i32, %arg1: i32) -> (i32, i32, i32) {
    %c0_i32 = arith.constant 0 : i32
    %c0_i32_0 = arith.constant 0 : i32
    return %arg0, %c0_i32, %arg1 : i32, i32, i32
  }
}

</mosaic_0001>

<llo_original>
// kernel: dense_layer_forward.1
$region0: #{dense_layer_forward.1}
  #allocation0 [shape = 'u32[]', space=smem, size = 0x4, offset = 0x4, fixed_abs, tag = 'smem constant byte address 0x4 - core index']
  #allocation1 [shape = 'u32[144,128]{1,0:T(1,128)}', space=vmem, size = 0x12000, scoped, tag = 'internal scratch']
  #allocation2 [shape = 'f32[8,142]{1,0:T(8,128)}', space=vmem, size = 0x2000, scoped, tag = 'scratch operand']
  %s0 = inlined_call_operand.vmem [shape: bf16[2,2,8,180], index: 0, kind: input, shape index: {}]
  %s1 = inlined_call_operand.vmem [shape: f32[8,1], index: 1, kind: input, shape index: {}]
  %s2 = inlined_call_operand.vmem [shape: f32[8,1], index: 2, kind: input, shape index: {}]
  %s3 = inlined_call_operand.vmem [shape: bf16[32,8], index: 3, kind: input, shape index: {}]
  %s4 = inlined_call_operand.vmem [shape: f32[32,1], index: 4, kind: input, shape index: {}]
  %s5 = inlined_call_operand.vmem [shape: bf16[9,8,32], index: 5, kind: input, shape index: {}]
  %s6 = inlined_call_operand.vmem [shape: f32[2,8,256], index: 6, kind: output, shape index: {}]
  %s7 = sld [smem:[#allocation0]]
  $region57: #{dense_layer_forward.1} parent=0
    _
  %s9 = ssub.s32 1, %s7
  %s10 = scalar_select 0, %s9, %s7
  loop: start=0, step=1, limit=6
  $region2: #{dense_layer_forward.1} parent=0 // loop_pre_header
    _
  $region3: #{dense_layer_forward.1} parent=0 // loop_header
    %s12 = sphi 0, %s16
    %p13 = scmp.ge.s32.totalorder %s12, 6
    %s19 = sphi 0, %s31
    %s20 = sphi 0, %s27
    %s21 = sphi 0, %s19
    %s22 = sphi 0, %s20
    %s23 = sphi 0, %s21
    %s24 = sphi 0, %s22
    %s36 = sphi 0, %s38
    %s39 = sphi 0, %s36
    %s40 = sphi 0, %s39
    %s56 = sphi 0, %s40
    %s60 = sphi 0, %s60
    %s62 = sphi 0, %s60
    %s63 = sphi 0, %s62
    %s77 = sphi 0, %s63
    %s81 = sphi 0, %s81
    %s83 = sphi 0, %s81
    %s84 = sphi 0, %s83
    %s98 = sphi 0, %s84
    %s102 = sphi 0, %s102
    %s104 = sphi 0, %s102
    %s105 = sphi 0, %s104
    %s119 = sphi 0, %s105
    %s123 = sphi 0, %s123
    %s125 = sphi 0, %s123
    %s126 = sphi 0, %s125
    %s140 = sphi 0, %s126
    %s144 = sphi 0, %s144
    %s146 = sphi 0, %s144
    %s147 = sphi 0, %s146
    %s161 = sphi 0, %s147
    %s169 = sphi 0, %s171
    %s172 = sphi 0, %s169
    %s173 = sphi 0, %s172
    %s189 = sphi 0, %s173
  $region4: #{dense_layer_forward.1} parent=0 // loop_header_branch
    %15 = sbr.rel (%p13) target = $region8
  $region5: #{dense_layer_forward.1} parent=0 // loop_body
    %s17 = ssub.s32 %s12, 1
    %s18 = ssub.s32 %s12, 2
    %s25 = sadd.s32 1, %s20
    %p26 = scmp.ge.s32.totalorder %s25, 2
    %s27 = scalar_select %p26, 0, %s25
    %s28 = sadd.s32 1, %s19
    %s29 = scalar_select %p26, %s28, %s19
    %p30 = scmp.ge.s32.totalorder %s29, 2
    %s31 = scalar_select %p30, 0, %s29
    %s32 = ssub.s32 %s19, %s31
    %s33 = ssub.s32 %s20, %s27
    %s34 = sor.u32 %s32, %s33
    %p35 = scmp.eq.s32.totalorder %s34, 0
    %s37 = sadd.s32 %s36, 1
    %s38 = scalar_select %p35, %s36, %s37
    %p41 = pneg %p35
    %p42 = scmp.eq.s32.totalorder %s12, 3
    %p43 = por %p41, %p42
    %p44 = scmp.ne.s32.totalorder %s36, %s39
    %p45 = scmp.eq.s32.totalorder %s12, 0
    %p46 = por %p44, %p45
    %p47 = scmp.ne.s32.totalorder %s36, %s39
    %p48 = scmp.eq.s32.totalorder %s17, 3
    %p49 = por %p47, %p48
    %p50 = scmp.ne.s32.totalorder %s39, %s40
    %p51 = scmp.eq.s32.totalorder %s17, 0
    %p52 = por %p50, %p51
    %p53 = scmp.ne.s32.totalorder %s39, %s40
    %p54 = scmp.eq.s32.totalorder %s18, 3
    %p55 = por %p53, %p54
    %p57 = scmp.ne.s32.totalorder %s40, %s56
    %p58 = scmp.eq.s32.totalorder %s18, 0
    %p59 = por %p57, %p58
    %s61 = sadd.s32 %s60, 1
    %p64 = scmp.eq.s32.totalorder %s12, 3
    %p65 = scmp.ne.s32.totalorder %s60, %s62
    %p66 = scmp.eq.s32.totalorder %s12, 0
    %p67 = por %p65, %p66
    %p68 = scmp.ne.s32.totalorder %s60, %s62
    %p69 = scmp.eq.s32.totalorder %s17, 3
    %p70 = por %p68, %p69
    %p71 = scmp.ne.s32.totalorder %s62, %s63
    %p72 = scmp.eq.s32.totalorder %s17, 0
    %p73 = por %p71, %p72
    %p74 = scmp.ne.s32.totalorder %s62, %s63
    %p75 = scmp.eq.s32.totalorder %s18, 3
    %p76 = por %p74, %p75
    %p78 = scmp.ne.s32.totalorder %s63, %s77
    %p79 = scmp.eq.s32.totalorder %s18, 0
    %p80 = por %p78, %p79
    %s82 = sadd.s32 %s81, 1
    %p85 = scmp.eq.s32.totalorder %s12, 3
    %p86 = scmp.ne.s32.totalorder %s81, %s83
    %p87 = scmp.eq.s32.totalorder %s12, 0
    %p88 = por %p86, %p87
    %p89 = scmp.ne.s32.totalorder %s81, %s83
    %p90 = scmp.eq.s32.totalorder %s17, 3
    %p91 = por %p89, %p90
    %p92 = scmp.ne.s32.totalorder %s83, %s84
    %p93 = scmp.eq.s32.totalorder %s17, 0
    %p94 = por %p92, %p93
    %p95 = scmp.ne.s32.totalorder %s83, %s84
    %p96 = scmp.eq.s32.totalorder %s18, 3
    %p97 = por %p95, %p96
    %p99 = scmp.ne.s32.totalorder %s84, %s98
    %p100 = scmp.eq.s32.totalorder %s18, 0
    %p101 = por %p99, %p100
    %s103 = sadd.s32 %s102, 1
    %p106 = scmp.eq.s32.totalorder %s12, 3
    %p107 = scmp.ne.s32.totalorder %s102, %s104
    %p108 = scmp.eq.s32.totalorder %s12, 0
    %p109 = por %p107, %p108
    %p110 = scmp.ne.s32.totalorder %s102, %s104
    %p111 = scmp.eq.s32.totalorder %s17, 3
    %p112 = por %p110, %p111
    %p113 = scmp.ne.s32.totalorder %s104, %s105
    %p114 = scmp.eq.s32.totalorder %s17, 0
    %p115 = por %p113, %p114
    %p116 = scmp.ne.s32.totalorder %s104, %s105
    %p117 = scmp.eq.s32.totalorder %s18, 3
    %p118 = por %p116, %p117
    %p120 = scmp.ne.s32.totalorder %s105, %s119
    %p121 = scmp.eq.s32.totalorder %s18, 0
    %p122 = por %p120, %p121
    %s124 = sadd.s32 %s123, 1
    %p127 = scmp.eq.s32.totalorder %s12, 3
    %p128 = scmp.ne.s32.totalorder %s123, %s125
    %p129 = scmp.eq.s32.totalorder %s12, 0
    %p130 = por %p128, %p129
    %p131 = scmp.ne.s32.totalorder %s123, %s125
    %p132 = scmp.eq.s32.totalorder %s17, 3
    %p133 = por %p131, %p132
    %p134 = scmp.ne.s32.totalorder %s125, %s126
    %p135 = scmp.eq.s32.totalorder %s17, 0
    %p136 = por %p134, %p135
    %p137 = scmp.ne.s32.totalorder %s125, %s126
    %p138 = scmp.eq.s32.totalorder %s18, 3
    %p139 = por %p137, %p138
    %p141 = scmp.ne.s32.totalorder %s126, %s140
    %p142 = scmp.eq.s32.totalorder %s18, 0
    %p143 = por %p141, %p142
    %s145 = sadd.s32 %s144, 1
    %p148 = scmp.eq.s32.totalorder %s12, 3
    %p149 = scmp.ne.s32.totalorder %s144, %s146
    %p150 = scmp.eq.s32.totalorder %s12, 0
    %p151 = por %p149, %p150
    %p152 = scmp.ne.s32.totalorder %s144, %s146
    %p153 = scmp.eq.s32.totalorder %s17, 3
    %p154 = por %p152, %p153
    %p155 = scmp.ne.s32.totalorder %s146, %s147
    %p156 = scmp.eq.s32.totalorder %s17, 0
    %p157 = por %p155, %p156
    %p158 = scmp.ne.s32.totalorder %s146, %s147
    %p159 = scmp.eq.s32.totalorder %s18, 3
    %p160 = por %p158, %p159
    %p162 = scmp.ne.s32.totalorder %s147, %s161
    %p163 = scmp.eq.s32.totalorder %s18, 0
    %p164 = por %p162, %p163
    %s165 = ssub.s32 %s19, %s31
    %s166 = ssub.s32 %s20, %s27
    %s167 = sor.u32 %s165, %s166
    %p168 = scmp.eq.s32.totalorder %s167, 0
    %s170 = sadd.s32 %s169, 1
    %s171 = scalar_select %p168, %s169, %s170
    %p174 = pneg %p168
    %p175 = scmp.eq.s32.totalorder %s12, 3
    %p176 = por %p174, %p175
    %p177 = scmp.ne.s32.totalorder %s169, %s172
    %p178 = scmp.eq.s32.totalorder %s12, 0
    %p179 = por %p177, %p178
    %p180 = scmp.ne.s32.totalorder %s169, %s172
    %p181 = scmp.eq.s32.totalorder %s17, 3
    %p182 = por %p180, %p181
    %p183 = scmp.ne.s32.totalorder %s172, %s173
    %p184 = scmp.eq.s32.totalorder %s17, 0
    %p185 = por %p183, %p184
    %p186 = scmp.ne.s32.totalorder %s172, %s173
    %p187 = scmp.eq.s32.totalorder %s18, 3
    %p188 = por %p186, %p187
    %p190 = scmp.ne.s32.totalorder %s173, %s189
    %p191 = scmp.eq.s32.totalorder %s18, 0
    %p192 = por %p190, %p191
    %p193 = scmp.le.s32.totalorder 1, %s12
    %p194 = scmp.lt.s32.totalorder %s12, 5
    %p195 = pnand %p193, %p194
    %p196 = pneg %p195
    // Predicated region
    $region9: #{dense_layer_forward.1} parent=5 // pred_check
      _
    $region10: #{dense_layer_forward.1} parent=5 // pred_check_branch
      %198 = sbr.rel (%p195) target = $region12
    $region11: #{dense_layer_forward.1} parent=5 // pred_region
      %s199 = ssub.s32 %s12, 1
      // Predicated region
      $region13: #{dense_layer_forward.1} parent=11 // pred_check
        %p200 = pneg %p73
      $region14: #{dense_layer_forward.1} parent=11 // pred_check_branch
        %202 = sbr.rel (%p200) target = $region16
      $region15: #{dense_layer_forward.1} parent=11 // pred_region
        _
      $region16: #{dense_layer_forward.1} parent=11 // pred_fallthru
        _
      // Predicated region
      $region17: #{dense_layer_forward.1} parent=11 // pred_check
        %p203 = pneg %p94
      $region18: #{dense_layer_forward.1} parent=11 // pred_check_branch
        %205 = sbr.rel (%p203) target = $region20
      $region19: #{dense_layer_forward.1} parent=11 // pred_region
        _
      $region20: #{dense_layer_forward.1} parent=11 // pred_fallthru
        _
      // Predicated region
      $region21: #{dense_layer_forward.1} parent=11 // pred_check
        %p206 = pneg %p115
      $region22: #{dense_layer_forward.1} parent=11 // pred_check_branch
        %208 = sbr.rel (%p206) target = $region24
      $region23: #{dense_layer_forward.1} parent=11 // pred_region
        _
      $region24: #{dense_layer_forward.1} parent=11 // pred_fallthru
        _
      // Predicated region
      $region25: #{dense_layer_forward.1} parent=11 // pred_check
        %p209 = pneg %p136
      $region26: #{dense_layer_forward.1} parent=11 // pred_check_branch
        %211 = sbr.rel (%p209) target = $region28
      $region27: #{dense_layer_forward.1} parent=11 // pred_region
        _
      $region28: #{dense_layer_forward.1} parent=11 // pred_fallthru
        _
      // Predicated region
      $region29: #{dense_layer_forward.1} parent=11 // pred_check
        %p212 = pneg %p157
      $region30: #{dense_layer_forward.1} parent=11 // pred_check_branch
        %214 = sbr.rel (%p212) target = $region32
      $region31: #{dense_layer_forward.1} parent=11 // pred_region
        _
      $region32: #{dense_layer_forward.1} parent=11 // pred_fallthru
        _
    $region12: #{dense_layer_forward.1} parent=5 // pred_fallthru
      _
    %p215 = scmp.lt.s32.totalorder %s12, 4
    // Predicated region
    $region33: #{dense_layer_forward.1} parent=5 // pred_check
      %p216 = pneg %p215
    $region34: #{dense_layer_forward.1} parent=5 // pred_check_branch
      %218 = sbr.rel (%p216) target = $region36
    $region35: #{dense_layer_forward.1} parent=5 // pred_region
      // Predicated region
      $region37: #{dense_layer_forward.1} parent=35 // pred_check
        %p219 = pneg %p46
      $region38: #{dense_layer_forward.1} parent=35 // pred_check_branch
        %221 = sbr.rel (%p219) target = $region40
      $region39: #{dense_layer_forward.1} parent=35 // pred_region
        %p222 = scmp.lt.s32.totalorder %s19, 1
        %s223 = scalar_select %p222, %s19, 1
        %p224 = scmp.lt.s32.totalorder %s20, 1
        %s225 = scalar_select %p224, %s20, 1
        %s226 = smul.addr %s225, 2
        %s227 = smul.addr %s223, 4
        %s228 = sadd.s32 %s226, %s227
        %s229 = smul.addr %s228, 4
        %s230 = scalar_lea.vmem %s0, %s229
      $region40: #{dense_layer_forward.1} parent=35 // pred_fallthru
        _
    $region36: #{dense_layer_forward.1} parent=5 // pred_fallthru
      _
    %p231 = scmp.le.s32.totalorder 1, %s12
    %p232 = scmp.lt.s32.totalorder %s12, 5
    %p233 = pnand %p231, %p232
    %p234 = pneg %p233
    // Predicated region
    $region41: #{dense_layer_forward.1} parent=5 // pred_check
      _
    $region42: #{dense_layer_forward.1} parent=5 // pred_check_branch
      %236 = sbr.rel (%p233) target = $region44
    $region43: #{dense_layer_forward.1} parent=5 // pred_region
      %s237 = ssub.s32 %s12, 1
      %p238 = scmp.lt.s32.totalorder %s21, 1
      %s239 = scalar_select %p238, %s21, 1
      %p240 = scmp.lt.s32.totalorder %s22, 1
      %s241 = scalar_select %p240, %s22, 1
      %s242 = smul.addr %s241, 2
      %s243 = smul.addr %s239, 4
      %s244 = sadd.s32 %s242, %s243
      %s245 = smul.addr %s244, 4
      %s246 = scalar_lea.vmem %s0, %s245
      %p247 = pneg %p52
      %p248 = pneg %p49
      %p249 = pneg %p73
      %p250 = pneg %p70
      %p251 = pneg %p94
      %p252 = pneg %p91
      %p253 = pneg %p115
      %p254 = pneg %p112
      %p255 = pneg %p136
      %p256 = pneg %p133
      %p257 = pneg %p157
      %p258 = pneg %p154
      %p259 = pneg %p185
      %p260 = pneg %p182
      %p261 = scmp.lt.s32.totalorder %s21, 1
      %s262 = scalar_select %p261, %s21, 1
      %p263 = scmp.lt.s32.totalorder %s22, 1
      %s264 = scalar_select %p263, %s22, 1
      %s265 = smul.addr %s262, 2
      %s266 = sadd.s32 %s264, %s265
      %s267 = smul.addr %s266, 8
      %s268 = scalar_lea.vmem %s6, %s267
      %p269 = scmp.lt.s32.totalorder %s21, 1
      %s270 = scalar_select %p269, %s21, 1
      %p271 = scmp.lt.s32.totalorder %s22, 1
      %s272 = scalar_select %p271, %s22, 1
      %s273 = smul.addr %s272, 2
      %s274 = smul.addr %s270, 4
      %s275 = sadd.s32 %s273, %s274
      %s276 = smul.addr %s275, 4
      %s277 = scalar_lea.vmem %s0, %s276
      %p278 = scmp.lt.s32.totalorder %s21, 1
      %s279 = scalar_select %p278, %s21, 1
      %p280 = scmp.lt.s32.totalorder %s22, 1
      %s281 = scalar_select %p280, %s22, 1
      %s282 = smul.addr %s279, 2
      %s283 = sadd.s32 %s281, %s282
      %s284 = smul.addr %s283, 8
      %s285 = scalar_lea.vmem %s6, %s284
      %v287 = vld [vmem:[%s277] sm:$0xff]
      %v288 = vunpack.c.l.bf16 %v287
      %v289 = vunpack.c.h.bf16 %v287
      %v290 = vld [vmem:[%s1] sm:$0xff]
      %292 = vset.pattern.permute.xlu0 0
      %293 = vperm.xlu0 %292, %v290
      %v294 = vpop.permute.xlu0 %293
      %v296 = vmul.f32 %v288, %v294
      %v297 = vmul.f32 %v289, %v294
      %v298 = vld [vmem:[%s2] sm:$0xff]
      %300 = vset.pattern.permute.xlu0 0
      %301 = vperm.xlu0 %300, %v298
      %v302 = vpop.permute.xlu0 %301
      %v304 = vadd.f32 %v296, %v302
      %v305 = vadd.f32 %v297, %v302
      %v306 = vmax.f32 %v304, 0.0
      %v307 = vmax.f32 %v305, 0.0
      %v308 = vld [vmem:[%s3] sm:$0xf]
      %v309 = vld [vmem:[%s3 + $0x4] sm:$0xf]
      %v310 = vld [vmem:[%s3 + $0x8] sm:$0xf]
      %v311 = vld [vmem:[%s3 + $0xc] sm:$0xf]
      %v312 = vpack.c.bf16 %v306, %v306
      %v313 = vpack.c.bf16 %v307, %v307
      %v314 = vlaneseq
      %v315 = vand.u32 %v314, 127
      %v316 = vadd.s32 %v315, 128
      %v317 = vcvt.s32.f32 %v315
      %v318 = vcvt.s32.f32 %v316
      %v319 = vmul.f32 %v317, 0.055555556
      %v320 = vmul.f32 %v318, 0.055555556
      %v321 = vadd.f32 %v319, 0.001
      %v322 = vadd.f32 %v320, 0.001
      %v323 = vfloor.f32 %v321
      %v324 = vfloor.f32 %v322
      %v325 = vmul.f32 %v323, 18.0
      %v326 = vmul.f32 %v324, 18.0
      %v327 = vsub.f32 %v317, %v325
      %v328 = vsub.f32 %v318, %v326
      %s329 = smul.u32 %s22, 8
      %s330 = scvt.s32.f32 %s329
      %v331 = vstv %s330
      %v332 = vadd.f32 %v323, %v331
      %v333 = vadd.f32 %v324, %v331
      %vm334 = vcmp.ge.f32.partialorder %v327, 1.0
      %vm335 = vcmp.ge.f32.partialorder %v328, 1.0
      %vm336 = vcmp.le.f32.partialorder %v327, 16.0
      %vm337 = vcmp.le.f32.partialorder %v328, 16.0
      %vm338 = vmand %vm334, %vm336
      %vm339 = vmand %vm335, %vm337
      %vm340 = vcmp.ge.f32.partialorder %v332, 1.0
      %vm341 = vcmp.ge.f32.partialorder %v333, 1.0
      %vm342 = vmand %vm338, %vm340
      %vm343 = vmand %vm339, %vm341
      %vm344 = vcmp.le.f32.partialorder %v332, 16.0
      %vm345 = vcmp.le.f32.partialorder %v333, 16.0
      %vm346 = vmand %vm342, %vm344
      %vm347 = vmand %vm343, %vm345
      %v348 = vsel %vm346, 1, 0
      %v349 = vsel %vm347, 1, 0
      %v350 = vcvt.s32.f32 %v348
      %v351 = vcvt.s32.f32 %v349
      %v352 = vld [vmem:[%s4] sm:$0xff]
      %v353 = vld [vmem:[%s4 + $0x8] sm:$0xff]
      %v354 = vld [vmem:[%s4 + $0x10] sm:$0xff]
      %v355 = vld [vmem:[%s4 + $0x18] sm:$0xff]
      %357 = vset.pattern.permute.xlu0 0
      %358 = vperm.xlu0 %357, %v352
      %v359 = vpop.permute.xlu0 %358
      %362 = vset.pattern.permute.xlu0 0
      %363 = vperm.xlu0 %362, %v353
      %v364 = vpop.permute.xlu0 %363
      %367 = vset.pattern.permute.xlu0 0
      %368 = vperm.xlu0 %367, %v354
      %v369 = vpop.permute.xlu0 %368
      %372 = vset.pattern.permute.xlu0 0
      %373 = vperm.xlu0 %372, %v355
      %v374 = vpop.permute.xlu0 %373
      %v380 = vunpack.c.l.b16 %v308
      %v381 = vunpack.c.l.b16 %v309
      %v382 = vunpack.c.l.b16 %v310
      %v383 = vunpack.c.l.b16 %v311
      %v384 = vpack.c.b16 %v381, %v380
      %v385 = vpack.c.b16 %v383, %v382
      %vm386 = vcmask 64512
      %v388 = vsel %vm386, %v384, 0
      %v391 = vsel %vm386, %v385, 0
      %vm393 = vcmask 1043456
      %v395 = vsel %vm393, %v312, 0
      %v398 = vsel %vm393, %v313, 0
      %400 = vmatprep.subr.bf16.mxu0 %v398
      %401 = vmatpush1.bf16.msra.mxu0 %v395
      %402 = vmatprep.subr.bf16.mxu0 0
      %403 = vmatpush1.bf16.msra.mxu0 0
      %404 = vmatprep.subr.bf16.mxu0 0
      %405 = vmatpush1.bf16.msra.mxu0 0
      %406 = vmatprep.subr.bf16.mxu0 0
      %407 = vmatpush1.bf16.msra.mxu0 0
      %408 = vmatprep.subr.bf16.mxu0 0
      %409 = vmatpush1.bf16.msra.mxu0 0
      %410 = vmatprep.subr.bf16.mxu0 0
      %411 = vmatpush1.bf16.msra.mxu0 0
      %412 = vmatprep.subr.bf16.mxu0 0
      %413 = vmatpush1.bf16.msra.mxu0 0
      %414 = vmatprep.subr.bf16.mxu0 0
      %415 = vmatpush1.bf16.msra.mxu0 0
      %416 = vmatprep.subr.bf16.mxu0 0
      %417 = vmatpush1.bf16.msra.mxu0 0
      %418 = vmatprep.subr.bf16.mxu0 0
      %419 = vmatpush1.bf16.msra.mxu0 0
      %420 = vmatprep.subr.bf16.mxu0 0
      %421 = vmatpush1.bf16.msra.mxu0 0
      %422 = vmatprep.subr.bf16.mxu0 0
      %423 = vmatpush1.bf16.msra.mxu0 0
      %424 = vmatprep.subr.bf16.mxu0 0
      %425 = vmatpush1.bf16.msra.mxu0 0
      %426 = vmatprep.subr.bf16.mxu0 0
      %427 = vmatpush1.bf16.msra.mxu0 0
      %428 = vmatprep.subr.bf16.mxu0 0
      %429 = vmatpush1.bf16.msra.mxu0 0
      %430 = vmatprep.subr.bf16.mxu0 0
      %431 = vmatpush1.bf16.msra.mxu0 0
      %432 = vmatprep.mubr.bf16.mxu0 0
      %433 = vmatmul.mubr.bf16.gmra.mrb[0].mxu0 %v388
      %v434 = vpop.f32.mrb[0].mxu0
      %v435 = vadd.f32 %v359, %v434
      %v436 = vpop.f32.mrb[0].mxu0
      %v437 = vadd.f32 %v359, %v436
      %v438 = vpop.f32.mrb[0].mxu0
      %v439 = vadd.f32 %v364, %v438
      %v440 = vpop.f32.mrb[0].mxu0
      %v441 = vadd.f32 %v364, %v440
      %442 = vmatprep.mubr.bf16.mxu0 0
      %443 = vmatmul.mubr.bf16.gmra.mrb[0].mxu0 %v391
      %v444 = vpop.f32.mrb[0].mxu0
      %v445 = vadd.f32 %v369, %v444
      %v446 = vpop.f32.mrb[0].mxu0
      %v447 = vadd.f32 %v369, %v446
      %v448 = vpop.f32.mrb[0].mxu0
      %v449 = vadd.f32 %v374, %v448
      %v450 = vpop.f32.mrb[0].mxu0
      %v451 = vadd.f32 %v374, %v450
      %452 = vdwg.mxu0
      %v453 = vmax.f32 %v435, 0.0
      %v454 = vmax.f32 %v437, 0.0
      %v455 = vmax.f32 %v439, 0.0
      %v456 = vmax.f32 %v441, 0.0
      %v457 = vmax.f32 %v445, 0.0
      %v458 = vmax.f32 %v447, 0.0
      %v459 = vmax.f32 %v449, 0.0
      %v460 = vmax.f32 %v451, 0.0
      %v461 = vmul.f32 %v453, %v350
      %v462 = vmul.f32 %v454, %v351
      %v463 = vmul.f32 %v455, %v350
      %v464 = vmul.f32 %v456, %v351
      %v465 = vmul.f32 %v457, %v350
      %v466 = vmul.f32 %v458, %v351
      %v467 = vmul.f32 %v459, %v350
      %v468 = vmul.f32 %v460, %v351
      %v469 = vpack.c.bf16 %v463, %v461
      %v470 = vpack.c.bf16 %v464, %v462
      %v471 = vpack.c.bf16 %v467, %v465
      %v472 = vpack.c.bf16 %v468, %v466
      %v473 = vld [vmem:[%s5] sm:$0xf]
      %vm474 = vcmask 261120
      %v476 = vsel %vm474, %v473, 0
      %478 = vmatprep.subr.bf16.mxu0 %v470
      %479 = vmatpush1.bf16.msra.mxu0 %v469
      %480 = vmatprep.subr.bf16.mxu0 %v472
      %481 = vmatpush1.bf16.msra.mxu0 %v471
      %482 = vmatprep.subr.bf16.mxu0 0
      %483 = vmatpush1.bf16.msra.mxu0 0
      %484 = vmatprep.subr.bf16.mxu0 0
      %485 = vmatpush1.bf16.msra.mxu0 0
      %486 = vmatprep.subr.bf16.mxu0 0
      %487 = vmatpush1.bf16.msra.mxu0 0
      %488 = vmatprep.subr.bf16.mxu0 0
      %489 = vmatpush1.bf16.msra.mxu0 0
      %490 = vmatprep.subr.bf16.mxu0 0
      %491 = vmatpush1.bf16.msra.mxu0 0
      %492 = vmatprep.subr.bf16.mxu0 0
      %493 = vmatpush1.bf16.msra.mxu0 0
      %494 = vmatprep.subr.bf16.mxu0 0
      %495 = vmatpush1.bf16.msra.mxu0 0
      %496 = vmatprep.subr.bf16.mxu0 0
      %497 = vmatpush1.bf16.msra.mxu0 0
      %498 = vmatprep.subr.bf16.mxu0 0
      %499 = vmatpush1.bf16.msra.mxu0 0
      %500 = vmatprep.subr.bf16.mxu0 0
      %501 = vmatpush1.bf16.msra.mxu0 0
      %502 = vmatprep.subr.bf16.mxu0 0
      %503 = vmatpush1.bf16.msra.mxu0 0
      %504 = vmatprep.subr.bf16.mxu0 0
      %505 = vmatpush1.bf16.msra.mxu0 0
      %506 = vmatprep.subr.bf16.mxu0 0
      %507 = vmatpush1.bf16.msra.mxu0 0
      %508 = vmatprep.subr.bf16.mxu0 0
      %509 = vmatpush1.bf16.msra.mxu0 0
      %510 = vmatprep.mubr.bf16.mxu0 0
      %511 = vmatmul.mubr.bf16.gmra.mrb[0].mxu0 %v476
      %v512 = vpop.f32.mrb[0].mxu0
      %v513 = vadd.f32 0.0, %v512
      %v514 = vpop.f32.mrb[0].mxu0
      %v515 = vadd.f32 0.0, %v514
      %v516 = vpop.f32.mrb[0].mxu0
      %v517 = vpop.f32.mrb[0].mxu0
      %518 = vdwg.mxu0
      %519 = vst [vmem:[#allocation2] sm:$0xff] %v513
      %vm520 = vcmask 113664
      %521 = vst.msk [vmem:[#allocation2 + $0x8] sm:$0xff] %vm520, %v515
      %s522 = scalar_lea.vmem %s5, 4
      %v523 = vld [vmem:[%s522] sm:$0xf]
      %528 = vrot.lane.b32.xlu0 %v469, 127
      %v529 = vpop.permute.xlu0 %528
      %530 = vrot.lane.b32.xlu0 %v470, 127
      %v531 = vpop.permute.xlu0 %530
      %532 = vrot.lane.b32.xlu0 %v471, 127
      %v533 = vpop.permute.xlu0 %532
      %534 = vrot.lane.b32.xlu0 %v472, 127
      %v535 = vpop.permute.xlu0 %534
      %vm536 = vcmask 1039360
      %v537 = vsel %vm536, %v529, %v531
      %v538 = vsel %vm536, %v533, %v535
      %v544 = vsel %vm474, %v523, 0
      %546 = vmatprep.subr.bf16.mxu0 %v531
      %547 = vmatpush1.bf16.msra.mxu0 %v537
      %548 = vmatprep.subr.bf16.mxu0 %v535
      %549 = vmatpush1.bf16.msra.mxu0 %v538
      %550 = vmatprep.subr.bf16.mxu0 0
      %551 = vmatpush1.bf16.msra.mxu0 0
      %552 = vmatprep.subr.bf16.mxu0 0
      %553 = vmatpush1.bf16.msra.mxu0 0
      %554 = vmatprep.subr.bf16.mxu0 0
      %555 = vmatpush1.bf16.msra.mxu0 0
      %556 = vmatprep.subr.bf16.mxu0 0
      %557 = vmatpush1.bf16.msra.mxu0 0
      %558 = vmatprep.subr.bf16.mxu0 0
      %559 = vmatpush1.bf16.msra.mxu0 0
      %560 = vmatprep.subr.bf16.mxu0 0
      %561 = vmatpush1.bf16.msra.mxu0 0
      %562 = vmatprep.subr.bf16.mxu0 0
      %563 = vmatpush1.bf16.msra.mxu0 0
      %564 = vmatprep.subr.bf16.mxu0 0
      %565 = vmatpush1.bf16.msra.mxu0 0
      %566 = vmatprep.subr.bf16.mxu0 0
      %567 = vmatpush1.bf16.msra.mxu0 0
      %568 = vmatprep.subr.bf16.mxu0 0
      %569 = vmatpush1.bf16.msra.mxu0 0
      %570 = vmatprep.subr.bf16.mxu0 0
      %571 = vmatpush1.bf16.msra.mxu0 0
      %572 = vmatprep.subr.bf16.mxu0 0
      %573 = vmatpush1.bf16.msra.mxu0 0
      %574 = vmatprep.subr.bf16.mxu0 0
      %575 = vmatpush1.bf16.msra.mxu0 0
      %576 = vmatprep.subr.bf16.mxu0 0
      %577 = vmatpush1.bf16.msra.mxu0 0
      %578 = vmatprep.mubr.bf16.mxu0 0
      %579 = vmatmul.mubr.bf16.gmra.mrb[0].mxu0 %v544
      %v580 = vpop.f32.mrb[0].mxu0
      %v581 = vadd.f32 0.0, %v580
      %v582 = vpop.f32.mrb[0].mxu0
      %v583 = vadd.f32 0.0, %v582
      %v584 = vpop.f32.mrb[0].mxu0
      %v585 = vpop.f32.mrb[0].mxu0
      %586 = vdwg.mxu0
      %v587 = vld [vmem:[#allocation2] sm:$0xff]
      %v588 = vld [vmem:[#allocation2 + $0x8] sm:$0xff]
      %v589 = vadd.f32 %v587, %v581
      %v590 = vadd.f32 %v588, %v583
      %591 = vst [vmem:[#allocation2] sm:$0xff] %v589
      %592 = vst.msk [vmem:[#allocation2 + $0x8] sm:$0xff] %vm520, %v590
      %s593 = scalar_lea.vmem %s5, 8
      %v594 = vld [vmem:[%s593] sm:$0xf]
      %595 = vrot.lane.b32.xlu0 %v469, 126
      %v596 = vpop.permute.xlu0 %595
      %597 = vrot.lane.b32.xlu0 %v470, 126
      %v598 = vpop.permute.xlu0 %597
      %599 = vrot.lane.b32.xlu0 %v471, 126
      %v600 = vpop.permute.xlu0 %599
      %601 = vrot.lane.b32.xlu0 %v472, 126
      %v602 = vpop.permute.xlu0 %601
      %vm603 = vcmask 1031168
      %v604 = vsel %vm603, %v596, %v598
      %v605 = vsel %vm603, %v600, %v602
      %v611 = vsel %vm474, %v594, 0
      %613 = vmatprep.subr.bf16.mxu0 %v598
      %614 = vmatpush1.bf16.msra.mxu0 %v604
      %615 = vmatprep.subr.bf16.mxu0 %v602
      %616 = vmatpush1.bf16.msra.mxu0 %v605
      %617 = vmatprep.subr.bf16.mxu0 0
      %618 = vmatpush1.bf16.msra.mxu0 0
      %619 = vmatprep.subr.bf16.mxu0 0
      %620 = vmatpush1.bf16.msra.mxu0 0
      %621 = vmatprep.subr.bf16.mxu0 0
      %622 = vmatpush1.bf16.msra.mxu0 0
      %623 = vmatprep.subr.bf16.mxu0 0
      %624 = vmatpush1.bf16.msra.mxu0 0
      %625 = vmatprep.subr.bf16.mxu0 0
      %626 = vmatpush1.bf16.msra.mxu0 0
      %627 = vmatprep.subr.bf16.mxu0 0
      %628 = vmatpush1.bf16.msra.mxu0 0
      %629 = vmatprep.subr.bf16.mxu0 0
      %630 = vmatpush1.bf16.msra.mxu0 0
      %631 = vmatprep.subr.bf16.mxu0 0
      %632 = vmatpush1.bf16.msra.mxu0 0
      %633 = vmatprep.subr.bf16.mxu0 0
      %634 = vmatpush1.bf16.msra.mxu0 0
      %635 = vmatprep.subr.bf16.mxu0 0
      %636 = vmatpush1.bf16.msra.mxu0 0
      %637 = vmatprep.subr.bf16.mxu0 0
      %638 = vmatpush1.bf16.msra.mxu0 0
      %639 = vmatprep.subr.bf16.mxu0 0
      %640 = vmatpush1.bf16.msra.mxu0 0
      %641 = vmatprep.subr.bf16.mxu0 0
      %642 = vmatpush1.bf16.msra.mxu0 0
      %643 = vmatprep.subr.bf16.mxu0 0
      %644 = vmatpush1.bf16.msra.mxu0 0
      %645 = vmatprep.mubr.bf16.mxu0 0
      %646 = vmatmul.mubr.bf16.gmra.mrb[0].mxu0 %v611
      %v647 = vpop.f32.mrb[0].mxu0
      %v648 = vadd.f32 0.0, %v647
      %v649 = vpop.f32.mrb[0].mxu0
      %v650 = vadd.f32 0.0, %v649
      %v651 = vpop.f32.mrb[0].mxu0
      %v652 = vpop.f32.mrb[0].mxu0
      %653 = vdwg.mxu0
      %v654 = vld [vmem:[#allocation2] sm:$0xff]
      %v655 = vld [vmem:[#allocation2 + $0x8] sm:$0xff]
      %v656 = vadd.f32 %v654, %v648
      %v657 = vadd.f32 %v655, %v650
      %658 = vst [vmem:[#allocation2] sm:$0xff] %v656
      %659 = vst.msk [vmem:[#allocation2 + $0x8] sm:$0xff] %vm520, %v657
      %s660 = scalar_lea.vmem %s5, 12
      %v661 = vld [vmem:[%s660] sm:$0xf]
      %662 = vrot.lane.b32.xlu0 %v469, 110
      %v663 = vpop.permute.xlu0 %662
      %664 = vrot.lane.b32.xlu0 %v470, 110
      %v665 = vpop.permute.xlu0 %664
      %666 = vrot.lane.b32.xlu0 %v471, 110
      %v667 = vpop.permute.xlu0 %666
      %668 = vrot.lane.b32.xlu0 %v472, 110
      %v669 = vpop.permute.xlu0 %668
      %vm670 = vcmask 900096
      %v671 = vsel %vm670, %v663, %v665
      %v672 = vsel %vm670, %v667, %v669
      %v678 = vsel %vm474, %v661, 0
      %680 = vmatprep.subr.bf16.mxu0 %v665
      %681 = vmatpush1.bf16.msra.mxu0 %v671
      %682 = vmatprep.subr.bf16.mxu0 %v669
      %683 = vmatpush1.bf16.msra.mxu0 %v672
      %684 = vmatprep.subr.bf16.mxu0 0
      %685 = vmatpush1.bf16.msra.mxu0 0
      %686 = vmatprep.subr.bf16.mxu0 0
      %687 = vmatpush1.bf16.msra.mxu0 0
      %688 = vmatprep.subr.bf16.mxu0 0
      %689 = vmatpush1.bf16.msra.mxu0 0
      %690 = vmatprep.subr.bf16.mxu0 0
      %691 = vmatpush1.bf16.msra.mxu0 0
      %692 = vmatprep.subr.bf16.mxu0 0
      %693 = vmatpush1.bf16.msra.mxu0 0
      %694 = vmatprep.subr.bf16.mxu0 0
      %695 = vmatpush1.bf16.msra.mxu0 0
      %696 = vmatprep.subr.bf16.mxu0 0
      %697 = vmatpush1.bf16.msra.mxu0 0
      %698 = vmatprep.subr.bf16.mxu0 0
      %699 = vmatpush1.bf16.msra.mxu0 0
      %700 = vmatprep.subr.bf16.mxu0 0
      %701 = vmatpush1.bf16.msra.mxu0 0
      %702 = vmatprep.subr.bf16.mxu0 0
      %703 = vmatpush1.bf16.msra.mxu0 0
      %704 = vmatprep.subr.bf16.mxu0 0
      %705 = vmatpush1.bf16.msra.mxu0 0
      %706 = vmatprep.subr.bf16.mxu0 0
      %707 = vmatpush1.bf16.msra.mxu0 0
      %708 = vmatprep.subr.bf16.mxu0 0
      %709 = vmatpush1.bf16.msra.mxu0 0
      %710 = vmatprep.subr.bf16.mxu0 0
      %711 = vmatpush1.bf16.msra.mxu0 0
      %712 = vmatprep.mubr.bf16.mxu0 0
      %713 = vmatmul.mubr.bf16.gmra.mrb[0].mxu0 %v678
      %v714 = vpop.f32.mrb[0].mxu0
      %v715 = vadd.f32 0.0, %v714
      %v716 = vpop.f32.mrb[0].mxu0
      %v717 = vadd.f32 0.0, %v716
      %v718 = vpop.f32.mrb[0].mxu0
      %v719 = vpop.f32.mrb[0].mxu0
      %720 = vdwg.mxu0
      %v721 = vld [vmem:[#allocation2] sm:$0xff]
      %v722 = vld [vmem:[#allocation2 + $0x8] sm:$0xff]
      %v723 = vadd.f32 %v721, %v715
      %v724 = vadd.f32 %v722, %v717
      %725 = vst [vmem:[#allocation2] sm:$0xff] %v723
      %726 = vst.msk [vmem:[#allocation2 + $0x8] sm:$0xff] %vm520, %v724
      %s727 = scalar_lea.vmem %s5, 16
      %v728 = vld [vmem:[%s727] sm:$0xf]
      %729 = vrot.lane.b32.xlu0 %v469, 109
      %v730 = vpop.permute.xlu0 %729
      %731 = vrot.lane.b32.xlu0 %v470, 109
      %v732 = vpop.permute.xlu0 %731
      %733 = vrot.lane.b32.xlu0 %v471, 109
      %v734 = vpop.permute.xlu0 %733
      %735 = vrot.lane.b32.xlu0 %v472, 109
      %v736 = vpop.permute.xlu0 %735
      %vm737 = vcmask 891904
      %v738 = vsel %vm737, %v730, %v732
      %v739 = vsel %vm737, %v734, %v736
      %v745 = vsel %vm474, %v728, 0
      %747 = vmatprep.subr.bf16.mxu0 %v732
      %748 = vmatpush1.bf16.msra.mxu0 %v738
      %749 = vmatprep.subr.bf16.mxu0 %v736
      %750 = vmatpush1.bf16.msra.mxu0 %v739
      %751 = vmatprep.subr.bf16.mxu0 0
      %752 = vmatpush1.bf16.msra.mxu0 0
      %753 = vmatprep.subr.bf16.mxu0 0
      %754 = vmatpush1.bf16.msra.mxu0 0
      %755 = vmatprep.subr.bf16.mxu0 0
      %756 = vmatpush1.bf16.msra.mxu0 0
      %757 = vmatprep.subr.bf16.mxu0 0
      %758 = vmatpush1.bf16.msra.mxu0 0
      %759 = vmatprep.subr.bf16.mxu0 0
      %760 = vmatpush1.bf16.msra.mxu0 0
      %761 = vmatprep.subr.bf16.mxu0 0
      %762 = vmatpush1.bf16.msra.mxu0 0
      %763 = vmatprep.subr.bf16.mxu0 0
      %764 = vmatpush1.bf16.msra.mxu0 0
      %765 = vmatprep.subr.bf16.mxu0 0
      %766 = vmatpush1.bf16.msra.mxu0 0
      %767 = vmatprep.subr.bf16.mxu0 0
      %768 = vmatpush1.bf16.msra.mxu0 0
      %769 = vmatprep.subr.bf16.mxu0 0
      %770 = vmatpush1.bf16.msra.mxu0 0
      %771 = vmatprep.subr.bf16.mxu0 0
      %772 = vmatpush1.bf16.msra.mxu0 0
      %773 = vmatprep.subr.bf16.mxu0 0
      %774 = vmatpush1.bf16.msra.mxu0 0
      %775 = vmatprep.subr.bf16.mxu0 0
      %776 = vmatpush1.bf16.msra.mxu0 0
      %777 = vmatprep.subr.bf16.mxu0 0
      %778 = vmatpush1.bf16.msra.mxu0 0
      %779 = vmatprep.mubr.bf16.mxu0 0
      %780 = vmatmul.mubr.bf16.gmra.mrb[0].mxu0 %v745
      %v781 = vpop.f32.mrb[0].mxu0
      %v782 = vadd.f32 0.0, %v781
      %v783 = vpop.f32.mrb[0].mxu0
      %v784 = vadd.f32 0.0, %v783
      %v785 = vpop.f32.mrb[0].mxu0
      %v786 = vpop.f32.mrb[0].mxu0
      %787 = vdwg.mxu0
      %v788 = vld [vmem:[#allocation2] sm:$0xff]
      %v789 = vld [vmem:[#allocation2 + $0x8] sm:$0xff]
      %v790 = vadd.f32 %v788, %v782
      %v791 = vadd.f32 %v789, %v784
      %792 = vst [vmem:[#allocation2] sm:$0xff] %v790
      %793 = vst.msk [vmem:[#allocation2 + $0x8] sm:$0xff] %vm520, %v791
      %s794 = scalar_lea.vmem %s5, 20
      %v795 = vld [vmem:[%s794] sm:$0xf]
      %796 = vrot.lane.b32.xlu0 %v469, 108
      %v797 = vpop.permute.xlu0 %796
      %798 = vrot.lane.b32.xlu0 %v470, 108
      %v799 = vpop.permute.xlu0 %798
      %800 = vrot.lane.b32.xlu0 %v471, 108
      %v801 = vpop.permute.xlu0 %800
      %802 = vrot.lane.b32.xlu0 %v472, 108
      %v803 = vpop.permute.xlu0 %802
      %vm804 = vcmask 883712
      %v805 = vsel %vm804, %v797, %v799
      %v806 = vsel %vm804, %v801, %v803
      %v812 = vsel %vm474, %v795, 0
      %814 = vmatprep.subr.bf16.mxu0 %v799
      %815 = vmatpush1.bf16.msra.mxu0 %v805
      %816 = vmatprep.subr.bf16.mxu0 %v803
      %817 = vmatpush1.bf16.msra.mxu0 %v806
      %818 = vmatprep.subr.bf16.mxu0 0
      %819 = vmatpush1.bf16.msra.mxu0 0
      %820 = vmatprep.subr.bf16.mxu0 0
      %821 = vmatpush1.bf16.msra.mxu0 0
      %822 = vmatprep.subr.bf16.mxu0 0
      %823 = vmatpush1.bf16.msra.mxu0 0
      %824 = vmatprep.subr.bf16.mxu0 0
      %825 = vmatpush1.bf16.msra.mxu0 0
      %826 = vmatprep.subr.bf16.mxu0 0
      %827 = vmatpush1.bf16.msra.mxu0 0
      %828 = vmatprep.subr.bf16.mxu0 0
      %829 = vmatpush1.bf16.msra.mxu0 0
      %830 = vmatprep.subr.bf16.mxu0 0
      %831 = vmatpush1.bf16.msra.mxu0 0
      %832 = vmatprep.subr.bf16.mxu0 0
      %833 = vmatpush1.bf16.msra.mxu0 0
      %834 = vmatprep.subr.bf16.mxu0 0
      %835 = vmatpush1.bf16.msra.mxu0 0
      %836 = vmatprep.subr.bf16.mxu0 0
      %837 = vmatpush1.bf16.msra.mxu0 0
      %838 = vmatprep.subr.bf16.mxu0 0
      %839 = vmatpush1.bf16.msra.mxu0 0
      %840 = vmatprep.subr.bf16.mxu0 0
      %841 = vmatpush1.bf16.msra.mxu0 0
      %842 = vmatprep.subr.bf16.mxu0 0
      %843 = vmatpush1.bf16.msra.mxu0 0
      %844 = vmatprep.subr.bf16.mxu0 0
      %845 = vmatpush1.bf16.msra.mxu0 0
      %846 = vmatprep.mubr.bf16.mxu0 0
      %847 = vmatmul.mubr.bf16.gmra.mrb[0].mxu0 %v812
      %v848 = vpop.f32.mrb[0].mxu0
      %v849 = vadd.f32 0.0, %v848
      %v850 = vpop.f32.mrb[0].mxu0
      %v851 = vadd.f32 0.0, %v850
      %v852 = vpop.f32.mrb[0].mxu0
      %v853 = vpop.f32.mrb[0].mxu0
      %854 = vdwg.mxu0
      %v855 = vld [vmem:[#allocation2] sm:$0xff]
      %v856 = vld [vmem:[#allocation2 + $0x8] sm:$0xff]
      %v857 = vadd.f32 %v855, %v849
      %v858 = vadd.f32 %v856, %v851
      %859 = vst [vmem:[#allocation2] sm:$0xff] %v857
      %860 = vst.msk [vmem:[#allocation2 + $0x8] sm:$0xff] %vm520, %v858
      %s861 = scalar_lea.vmem %s5, 24
      %v862 = vld [vmem:[%s861] sm:$0xf]
      %863 = vrot.lane.b32.xlu0 %v469, 92
      %v864 = vpop.permute.xlu0 %863
      %865 = vrot.lane.b32.xlu0 %v470, 92
      %v866 = vpop.permute.xlu0 %865
      %867 = vrot.lane.b32.xlu0 %v471, 92
      %v868 = vpop.permute.xlu0 %867
      %869 = vrot.lane.b32.xlu0 %v472, 92
      %v870 = vpop.permute.xlu0 %869
      %vm871 = vcmask 752640
      %v872 = vsel %vm871, %v864, %v866
      %v873 = vsel %vm871, %v868, %v870
      %v879 = vsel %vm474, %v862, 0
      %881 = vmatprep.subr.bf16.mxu0 %v866
      %882 = vmatpush1.bf16.msra.mxu0 %v872
      %883 = vmatprep.subr.bf16.mxu0 %v870
      %884 = vmatpush1.bf16.msra.mxu0 %v873
      %885 = vmatprep.subr.bf16.mxu0 0
      %886 = vmatpush1.bf16.msra.mxu0 0
      %887 = vmatprep.subr.bf16.mxu0 0
      %888 = vmatpush1.bf16.msra.mxu0 0
      %889 = vmatprep.subr.bf16.mxu0 0
      %890 = vmatpush1.bf16.msra.mxu0 0
      %891 = vmatprep.subr.bf16.mxu0 0
      %892 = vmatpush1.bf16.msra.mxu0 0
      %893 = vmatprep.subr.bf16.mxu0 0
      %894 = vmatpush1.bf16.msra.mxu0 0
      %895 = vmatprep.subr.bf16.mxu0 0
      %896 = vmatpush1.bf16.msra.mxu0 0
      %897 = vmatprep.subr.bf16.mxu0 0
      %898 = vmatpush1.bf16.msra.mxu0 0
      %899 = vmatprep.subr.bf16.mxu0 0
      %900 = vmatpush1.bf16.msra.mxu0 0
      %901 = vmatprep.subr.bf16.mxu0 0
      %902 = vmatpush1.bf16.msra.mxu0 0
      %903 = vmatprep.subr.bf16.mxu0 0
      %904 = vmatpush1.bf16.msra.mxu0 0
      %905 = vmatprep.subr.bf16.mxu0 0
      %906 = vmatpush1.bf16.msra.mxu0 0
      %907 = vmatprep.subr.bf16.mxu0 0
      %908 = vmatpush1.bf16.msra.mxu0 0
      %909 = vmatprep.subr.bf16.mxu0 0
      %910 = vmatpush1.bf16.msra.mxu0 0
      %911 = vmatprep.subr.bf16.mxu0 0
      %912 = vmatpush1.bf16.msra.mxu0 0
      %913 = vmatprep.mubr.bf16.mxu0 0
      %914 = vmatmul.mubr.bf16.gmra.mrb[0].mxu0 %v879
      %v915 = vpop.f32.mrb[0].mxu0
      %v916 = vadd.f32 0.0, %v915
      %v917 = vpop.f32.mrb[0].mxu0
      %v918 = vadd.f32 0.0, %v917
      %v919 = vpop.f32.mrb[0].mxu0
      %v920 = vpop.f32.mrb[0].mxu0
      %921 = vdwg.mxu0
      %v922 = vld [vmem:[#allocation2] sm:$0xff]
      %v923 = vld [vmem:[#allocation2 + $0x8] sm:$0xff]
      %v924 = vadd.f32 %v922, %v916
      %v925 = vadd.f32 %v923, %v918
      %926 = vst [vmem:[#allocation2] sm:$0xff] %v924
      %927 = vst.msk [vmem:[#allocation2 + $0x8] sm:$0xff] %vm520, %v925
      %s928 = scalar_lea.vmem %s5, 28
      %v929 = vld [vmem:[%s928] sm:$0xf]
      %930 = vrot.lane.b32.xlu0 %v469, 91
      %v931 = vpop.permute.xlu0 %930
      %932 = vrot.lane.b32.xlu0 %v470, 91
      %v933 = vpop.permute.xlu0 %932
      %934 = vrot.lane.b32.xlu0 %v471, 91
      %v935 = vpop.permute.xlu0 %934
      %936 = vrot.lane.b32.xlu0 %v472, 91
      %v937 = vpop.permute.xlu0 %936
      %vm938 = vcmask 744448
      %v939 = vsel %vm938, %v931, %v933
      %v940 = vsel %vm938, %v935, %v937
      %v946 = vsel %vm474, %v929, 0
      %948 = vmatprep.subr.bf16.mxu0 %v933
      %949 = vmatpush1.bf16.msra.mxu0 %v939
      %950 = vmatprep.subr.bf16.mxu0 %v937
      %951 = vmatpush1.bf16.msra.mxu0 %v940
      %952 = vmatprep.subr.bf16.mxu0 0
      %953 = vmatpush1.bf16.msra.mxu0 0
      %954 = vmatprep.subr.bf16.mxu0 0
      %955 = vmatpush1.bf16.msra.mxu0 0
      %956 = vmatprep.subr.bf16.mxu0 0
      %957 = vmatpush1.bf16.msra.mxu0 0
      %958 = vmatprep.subr.bf16.mxu0 0
      %959 = vmatpush1.bf16.msra.mxu0 0
      %960 = vmatprep.subr.bf16.mxu0 0
      %961 = vmatpush1.bf16.msra.mxu0 0
      %962 = vmatprep.subr.bf16.mxu0 0
      %963 = vmatpush1.bf16.msra.mxu0 0
      %964 = vmatprep.subr.bf16.mxu0 0
      %965 = vmatpush1.bf16.msra.mxu0 0
      %966 = vmatprep.subr.bf16.mxu0 0
      %967 = vmatpush1.bf16.msra.mxu0 0
      %968 = vmatprep.subr.bf16.mxu0 0
      %969 = vmatpush1.bf16.msra.mxu0 0
      %970 = vmatprep.subr.bf16.mxu0 0
      %971 = vmatpush1.bf16.msra.mxu0 0
      %972 = vmatprep.subr.bf16.mxu0 0
      %973 = vmatpush1.bf16.msra.mxu0 0
      %974 = vmatprep.subr.bf16.mxu0 0
      %975 = vmatpush1.bf16.msra.mxu0 0
      %976 = vmatprep.subr.bf16.mxu0 0
      %977 = vmatpush1.bf16.msra.mxu0 0
      %978 = vmatprep.subr.bf16.mxu0 0
      %979 = vmatpush1.bf16.msra.mxu0 0
      %980 = vmatprep.mubr.bf16.mxu0 0
      %981 = vmatmul.mubr.bf16.gmra.mrb[0].mxu0 %v946
      %v982 = vpop.f32.mrb[0].mxu0
      %v983 = vadd.f32 0.0, %v982
      %v984 = vpop.f32.mrb[0].mxu0
      %v985 = vadd.f32 0.0, %v984
      %v986 = vpop.f32.mrb[0].mxu0
      %v987 = vpop.f32.mrb[0].mxu0
      %988 = vdwg.mxu0
      %v989 = vld [vmem:[#allocation2] sm:$0xff]
      %v990 = vld [vmem:[#allocation2 + $0x8] sm:$0xff]
      %v991 = vadd.f32 %v989, %v983
      %v992 = vadd.f32 %v990, %v985
      %993 = vst [vmem:[#allocation2] sm:$0xff] %v991
      %994 = vst.msk [vmem:[#allocation2 + $0x8] sm:$0xff] %vm520, %v992
      %s995 = scalar_lea.vmem %s5, 32
      %v996 = vld [vmem:[%s995] sm:$0xf]
      %997 = vrot.lane.b32.xlu0 %v469, 90
      %v998 = vpop.permute.xlu0 %997
      %999 = vrot.lane.b32.xlu0 %v470, 90
      %v1000 = vpop.permute.xlu0 %999
      %1001 = vrot.lane.b32.xlu0 %v471, 90
      %v1002 = vpop.permute.xlu0 %1001
      %1003 = vrot.lane.b32.xlu0 %v472, 90
      %v1004 = vpop.permute.xlu0 %1003
      %vm1005 = vcmask 736256
      %v1006 = vsel %vm1005, %v998, %v1000
      %v1007 = vsel %vm1005, %v1002, %v1004
      %v1013 = vsel %vm474, %v996, 0
      %1015 = vmatprep.subr.bf16.mxu0 %v1000
      %1016 = vmatpush1.bf16.msra.mxu0 %v1006
      %1017 = vmatprep.subr.bf16.mxu0 %v1004
      %1018 = vmatpush1.bf16.msra.mxu0 %v1007
      %1019 = vmatprep.subr.bf16.mxu0 0
      %1020 = vmatpush1.bf16.msra.mxu0 0
      %1021 = vmatprep.subr.bf16.mxu0 0
      %1022 = vmatpush1.bf16.msra.mxu0 0
      %1023 = vmatprep.subr.bf16.mxu0 0
      %1024 = vmatpush1.bf16.msra.mxu0 0
      %1025 = vmatprep.subr.bf16.mxu0 0
      %1026 = vmatpush1.bf16.msra.mxu0 0
      %1027 = vmatprep.subr.bf16.mxu0 0
      %1028 = vmatpush1.bf16.msra.mxu0 0
      %1029 = vmatprep.subr.bf16.mxu0 0
      %1030 = vmatpush1.bf16.msra.mxu0 0
      %1031 = vmatprep.subr.bf16.mxu0 0
      %1032 = vmatpush1.bf16.msra.mxu0 0
      %1033 = vmatprep.subr.bf16.mxu0 0
      %1034 = vmatpush1.bf16.msra.mxu0 0
      %1035 = vmatprep.subr.bf16.mxu0 0
      %1036 = vmatpush1.bf16.msra.mxu0 0
      %1037 = vmatprep.subr.bf16.mxu0 0
      %1038 = vmatpush1.bf16.msra.mxu0 0
      %1039 = vmatprep.subr.bf16.mxu0 0
      %1040 = vmatpush1.bf16.msra.mxu0 0
      %1041 = vmatprep.subr.bf16.mxu0 0
      %1042 = vmatpush1.bf16.msra.mxu0 0
      %1043 = vmatprep.subr.bf16.mxu0 0
      %1044 = vmatpush1.bf16.msra.mxu0 0
      %1045 = vmatprep.subr.bf16.mxu0 0
      %1046 = vmatpush1.bf16.msra.mxu0 0
      %1047 = vmatprep.mubr.bf16.mxu0 0
      %1048 = vmatmul.mubr.bf16.gmra.mrb[0].mxu0 %v1013
      %v1049 = vpop.f32.mrb[0].mxu0
      %v1050 = vadd.f32 0.0, %v1049
      %v1051 = vpop.f32.mrb[0].mxu0
      %v1052 = vadd.f32 0.0, %v1051
      %v1053 = vpop.f32.mrb[0].mxu0
      %v1054 = vpop.f32.mrb[0].mxu0
      %1055 = vdwg.mxu0
      %v1056 = vld [vmem:[#allocation2] sm:$0xff]
      %v1057 = vld [vmem:[#allocation2 + $0x8] sm:$0xff]
      %v1058 = vadd.f32 %v1056, %v1050
      %v1059 = vadd.f32 %v1057, %v1052
      %1060 = vst [vmem:[#allocation2] sm:$0xff] %v1058
      %1061 = vst.msk [vmem:[#allocation2 + $0x8] sm:$0xff] %vm520, %v1059
      %v1062 = vld [vmem:[#allocation2] sm:$0xff]
      %vm1063 = vcmask 130048
      %1064 = vst.msk [vmem:[%s285] sm:$0xff] %vm1063, %v1062
      %v1065 = vld [vmem:[#allocation2] sm:$0xff]
      %1067 = vrot.lane.b32.xlu0 %v1065, 126
      %v1068 = vpop.permute.xlu0 %1067
      %vm1070 = vcmask 261248
      %1071 = vst.msk [vmem:[%s285] sm:$0xff] %vm1070, %v1068
      %v1072 = vld [vmem:[#allocation2] sm:$0xff]
      %1074 = vrot.lane.b32.xlu0 %v1072, 124
      %v1075 = vpop.permute.xlu0 %1074
      %vm1077 = vcmask 392448
      %1078 = vst.msk [vmem:[%s285] sm:$0xff] %vm1077, %v1075
      %v1079 = vld [vmem:[#allocation2] sm:$0xff]
      %1081 = vrot.lane.b32.xlu0 %v1079, 122
      %v1082 = vpop.permute.xlu0 %1081
      %vm1084 = vcmask 523648
      %1085 = vst.msk [vmem:[%s285] sm:$0xff] %vm1084, %v1082
      %v1086 = vld [vmem:[#allocation2] sm:$0xff]
      %1088 = vrot.lane.b32.xlu0 %v1086, 120
      %v1089 = vpop.permute.xlu0 %1088
      %vm1091 = vcmask 654848
      %1092 = vst.msk [vmem:[%s285] sm:$0xff] %vm1091, %v1089
      %v1093 = vld [vmem:[#allocation2] sm:$0xff]
      %1095 = vrot.lane.b32.xlu0 %v1093, 118
      %v1096 = vpop.permute.xlu0 %1095
      %vm1098 = vcmask 786048
      %1099 = vst.msk [vmem:[%s285] sm:$0xff] %vm1098, %v1096
      %v1100 = vld [vmem:[#allocation2] sm:$0xff]
      %1102 = vrot.lane.b32.xlu0 %v1100, 116
      %v1103 = vpop.permute.xlu0 %1102
      %vm1105 = vcmask 917248
      %1106 = vst.msk [vmem:[%s285] sm:$0xff] %vm1105, %v1103
      %v1107 = vld [vmem:[#allocation2] sm:$0xff]
      %v1108 = vld [vmem:[#allocation2 + $0x8] sm:$0xff]
      %1111 = vrot.lane.b32.xlu0 %v1107, 114
      %v1112 = vpop.permute.xlu0 %1111
      %1113 = vrot.lane.b32.xlu0 %v1108, 114
      %v1114 = vpop.permute.xlu0 %1113
      %vm1115 = vcmask 932864
      %v1116 = vsel %vm1115, %v1112, %v1114
      %vm1118 = vcmask 1048448
      %1119 = vst.msk [vmem:[%s285] sm:$0xff] %vm1118, %v1116
      %p1120 = scmp.lt.s32.totalorder %s21, 1
      %s1121 = scalar_select %p1120, %s21, 1
      %p1122 = scmp.lt.s32.totalorder %s22, 1
      %s1123 = scalar_select %p1122, %s22, 1
      %s1124 = smul.addr %s1121, 2
      %s1125 = sadd.s32 %s1123, %s1124
      %s1126 = smul.addr %s1125, 8
      %s1127 = scalar_lea.vmem %s6, %s1126
      // Predicated region
      $region45: #{dense_layer_forward.1} parent=43 // pred_check
        %p1128 = pneg %p182
      $region46: #{dense_layer_forward.1} parent=43 // pred_check_branch
        %1130 = sbr.rel (%p1128) target = $region48
      $region47: #{dense_layer_forward.1} parent=43 // pred_region
        _
      $region48: #{dense_layer_forward.1} parent=43 // pred_fallthru
        _
    $region44: #{dense_layer_forward.1} parent=5 // pred_fallthru
      _
    %p1131 = scmp.le.s32.totalorder 2, %s12
    // Predicated region
    $region49: #{dense_layer_forward.1} parent=5 // pred_check
      %p1132 = pneg %p1131
    $region50: #{dense_layer_forward.1} parent=5 // pred_check_branch
      %1134 = sbr.rel (%p1132) target = $region52
    $region51: #{dense_layer_forward.1} parent=5 // pred_region
      %s1135 = ssub.s32 %s12, 2
      // Predicated region
      $region53: #{dense_layer_forward.1} parent=51 // pred_check
        %p1136 = pneg %p188
      $region54: #{dense_layer_forward.1} parent=51 // pred_check_branch
        %1138 = sbr.rel (%p1136) target = $region56
      $region55: #{dense_layer_forward.1} parent=51 // pred_region
        %p1139 = scmp.lt.s32.totalorder %s23, 1
        %s1140 = scalar_select %p1139, %s23, 1
        %p1141 = scmp.lt.s32.totalorder %s24, 1
        %s1142 = scalar_select %p1141, %s24, 1
        %s1143 = smul.addr %s1140, 2
        %s1144 = sadd.s32 %s1142, %s1143
        %s1145 = smul.addr %s1144, 8
        %s1146 = scalar_lea.vmem %s6, %s1145
      $region56: #{dense_layer_forward.1} parent=51 // pred_fallthru
        _
    $region52: #{dense_layer_forward.1} parent=5 // pred_fallthru
      _
  $region6: #{dense_layer_forward.1} parent=0 // loop_footer
    %s16 = sadd.s32 1, %s12
  $region7: #{dense_layer_forward.1} parent=0 // loop_footer_branch
    %11 = sbr.rel target = $region3
  $region8: #{dense_layer_forward.1} parent=0 // loop_exit
    _

</llo_original>
